<compile_context>
chip_gen: v6e
topology: v6e:2x2x1
jax: 0.10.0
libtpu: 0.0.40
codegen_flags: <defaults>
</compile_context>

<pallas_src>
import jax
import jax.numpy as jnp
from jax.experimental import pallas as pl
from jax.experimental.pallas import tpu as pltpu

LANE = 128
SUBLANE = 8


# ------------------------------ small helpers -------------------------------
def _round_up(x, m):
    return ((x + m - 1) // m) * m


def _pad2d(x, rows, cols):
    r, c = x.shape
    return jnp.pad(x, ((0, rows - r), (0, cols - c)))


# ------------------------------- kernel bodies ------------------------------
def _node_kernel(x_ref, w1_ref, b1_ref, w2_ref, b2_ref, wp_ref, o_ref):
    """compress(node_f) projected through the split edge-MLP W1 slice.

    Input blocks carry a leading size-1 "side" dim (0=var, 1=con) selected by
    the grid; weights for the current side are picked by the index_map.  The
    output is a flat [2*R_pad, H_pad] table (var rows first, con rows second).
    """
    x = x_ref[0]                                     # [TR, F_pad]
    h = jnp.dot(x, w1_ref[0], preferred_element_type=jnp.float32)
    h = jnp.maximum(h + b1_ref[0], 0.0)
    c = jnp.dot(h, w2_ref[0], preferred_element_type=jnp.float32)
    c = jnp.maximum(c + b2_ref[0], 0.0)
    proj = jnp.dot(c, wp_ref[0], preferred_element_type=jnp.float32)
    o_ref[...] = proj.astype(o_ref.dtype)            # [TR, H_pad]


def _edge_kernel(idxv_ref, idxc_ref, edge_ref, nproj_ref,
                 w1e_ref, b1_ref, w2_ref, b2_ref, o_ref):
    """Per-edge gather (in VMEM, single two-hot MXU matmul) + edge MLP."""
    te = edge_ref.shape[0]
    rows2 = nproj_ref.shape[0]                       # 2 * R_pad

    # Gather var_proj[idx_v] + con_proj[idx_c] in ONE matmul: idx_c is already
    # shifted by R_pad on the host, so each two-hot row has exactly one 1 in
    # the var half and one 1 in the con half (padded edge rows are all zero).
    # TODO(synk): for very large node tables replace the two-hot MXU gather
    # with a native dynamic-gather / DMA-gather path.
    node_iota = jax.lax.broadcasted_iota(jnp.int32, (te, rows2), 1)
    two_hot = jnp.logical_or(node_iota == idxv_ref[...],
                             node_iota == idxc_ref[...]).astype(jnp.float32)
    gsum = jnp.dot(two_hot, nproj_ref[...], preferred_element_type=jnp.float32)

    h = jnp.dot(edge_ref[...], w1e_ref[...], preferred_element_type=jnp.float32)
    h = jnp.maximum(h + gsum + b1_ref[...], 0.0)
    y = jnp.dot(h, w2_ref[...], preferred_element_type=jnp.float32) + b2_ref[...]
    o_ref[...] = y.astype(o_ref.dtype)


# ------------------------------- pallas wrappers -----------------------------
def _node_compress_project(nodes, w1s, b1s, w2s, b2s, wps, *, tr):
    two, r_pad, f_pad = nodes.shape
    h_pad = w1s.shape[2]
    nblk = r_pad // tr
    return pl.pallas_call(
        _node_kernel,
        out_shape=jax.ShapeDtypeStruct((2 * r_pad, h_pad), jnp.float32),
        grid=(2, nblk),
        in_specs=[
            pl.BlockSpec((1, tr, f_pad), lambda s, r: (s, r, 0)),      # node feats
            pl.BlockSpec((1, f_pad, h_pad), lambda s, r: (s, 0, 0)),   # W1
            pl.BlockSpec((1, 1, h_pad), lambda s, r: (s, 0, 0)),       # b1
            pl.BlockSpec((1, h_pad, h_pad), lambda s, r: (s, 0, 0)),   # W2
            pl.BlockSpec((1, 1, h_pad), lambda s, r: (s, 0, 0)),       # b2
            pl.BlockSpec((1, h_pad, h_pad), lambda s, r: (s, 0, 0)),   # edge-W1 slice
        ],
        out_specs=pl.BlockSpec((tr, h_pad), lambda s, r: (s * nblk + r, 0)),
        compiler_params=pltpu.CompilerParams(
            dimension_semantics=("parallel", "parallel")),
    )(nodes, w1s, b1s, w2s, b2s, wps)


def _edge_mlp(idx_v, idx_c, edge_f, nproj, w1e, b1, w2, b2, *, te):
    e_pad, ein_pad = edge_f.shape
    rows2, h_pad = nproj.shape
    o_pad = w2.shape[1]
    return pl.pallas_call(
        _edge_kernel,
        out_shape=jax.ShapeDtypeStruct((e_pad, o_pad), jnp.float32),
        grid=(e_pad // te,),
        in_specs=[
            pl.BlockSpec((te, 1), lambda i: (i, 0)),                   # idx_var
            pl.BlockSpec((te, 1), lambda i: (i, 0)),                   # idx_con (+R_pad)
            pl.BlockSpec((te, ein_pad), lambda i: (i, 0)),             # edge feats
            pl.BlockSpec((rows2, h_pad), lambda i: (0, 0)),            # node_proj (resident)
            pl.BlockSpec((ein_pad, h_pad), lambda i: (0, 0)),          # W1_edge
            pl.BlockSpec((1, h_pad), lambda i: (0, 0)),                # b1
            pl.BlockSpec((h_pad, o_pad), lambda i: (0, 0)),            # W2
            pl.BlockSpec((1, o_pad), lambda i: (0, 0)),                # b2
        ],
        out_specs=pl.BlockSpec((te, o_pad), lambda i: (i, 0)),
        compiler_params=pltpu.CompilerParams(
            dimension_semantics=("parallel",)),
    )(idx_v, idx_c, edge_f, nproj, w1e, b1, w2, b2)


# ------------------------ parameter initialization ---------------------------
def _linear_init(key, fan_in, fan_out):
    """Matches torch.nn.Linear default init (U(-k, k), k = 1/sqrt(fan_in))."""
    k = 1.0 / jnp.sqrt(jnp.float32(fan_in))
    kw, kb = jax.random.split(key)
    w = jax.random.uniform(kw, (fan_in, fan_out), jnp.float32, -k, k)
    b = jax.random.uniform(kb, (1, fan_out), jnp.float32, -k, k)
    return w, b


def init_edge_updater_params(key, num_input_edge_channels, num_hidden_channels,
                             num_output_edge_channels, num_var_channels,
                             num_con_channels):
    H = num_hidden_channels
    keys = jax.random.split(key, 6)
    vw1, vb1 = _linear_init(keys[0], num_var_channels, H)
    vw2, vb2 = _linear_init(keys[1], H, H)
    cw1, cb1 = _linear_init(keys[2], num_con_channels, H)
    cw2, cb2 = _linear_init(keys[3], H, H)
    ew1, eb1 = _linear_init(keys[4], num_input_edge_channels + 2 * H, H)
    ew2, eb2 = _linear_init(keys[5], H, num_output_edge_channels)
    return {
        "var": (vw1, vb1, vw2, vb2),
        "con": (cw1, cb1, cw2, cb2),
        "edge": (ew1, eb1, ew2, eb2),
    }


# ------------------------------- forward pass --------------------------------
def edge_updater_forward(params, var_f, con_f, combined_edge_f, edge_index_var_con):
    vw1, vb1, vw2, vb2 = params["var"]
    cw1, cb1, cw2, cb2 = params["con"]
    ew1, eb1, ew2, eb2 = params["edge"]

    V, Fv = var_f.shape
    C, Fc = con_f.shape
    E, Ein = combined_edge_f.shape
    H = vw1.shape[1]
    O = ew2.shape[1]

    f_pad = _round_up(max(Fv, Fc), LANE)
    h_pad = _round_up(H, LANE)
    ein_pad = _round_up(Ein, LANE)
    o_pad = _round_up(O, LANE)

    # node-row tiling (var/con share a padded row count)
    R = max(V, C)
    tr = min(512, _round_up(R, SUBLANE))
    r_pad = _round_up(R, tr)

    # edge-row tiling (lane axis of the index blocks => multiple of 128)
    te = min(1024, _round_up(E, LANE))
    e_pad = _round_up(E, te)

    # Split edge-MLP first layer: cat([edge, var, con]) @ ew1
    #   == edge @ ew1[:Ein] + var_c @ ew1[Ein:Ein+H] + con_c @ ew1[Ein+H:]
    w1e = ew1[:Ein]
    w1v = ew1[Ein:Ein + H]
    w1c = ew1[Ein + H:Ein + 2 * H]

    # ---- node kernel inputs (var/con stacked on a leading axis of size 2) ----
    nodes = jnp.stack([_pad2d(var_f, r_pad, f_pad), _pad2d(con_f, r_pad, f_pad)])
    w1s = jnp.stack([_pad2d(vw1, f_pad, h_pad), _pad2d(cw1, f_pad, h_pad)])
    b1s = jnp.stack([_pad2d(vb1, 1, h_pad), _pad2d(cb1, 1, h_pad)])
    w2s = jnp.stack([_pad2d(vw2, h_pad, h_pad), _pad2d(cw2, h_pad, h_pad)])
    b2s = jnp.stack([_pad2d(vb2, 1, h_pad), _pad2d(cb2, 1, h_pad)])
    wps = jnp.stack([_pad2d(w1v, h_pad, h_pad), _pad2d(w1c, h_pad, h_pad)])

    nproj = _node_compress_project(nodes, w1s, b1s, w2s, b2s, wps, tr=tr)

    # ---- edge kernel inputs ----
    # con indices pre-shifted into the con half of the flat node_proj table;
    # padded edge rows use an out-of-range sentinel -> two-hot row == 0.
    idx = edge_index_var_con.astype(jnp.int32)
    sentinel = 2 * r_pad
    idx_v = jnp.pad(idx[0], (0, e_pad - E), constant_values=sentinel)[:, None]
    idx_c = jnp.pad(idx[1] + r_pad, (0, e_pad - E),
                    constant_values=sentinel)[:, None]
    edge_pad = _pad2d(combined_edge_f, e_pad, ein_pad)
    w1e_p = _pad2d(w1e, ein_pad, h_pad)
    b1_p = _pad2d(eb1, 1, h_pad)
    w2_p = _pad2d(ew2, h_pad, o_pad)
    b2_p = _pad2d(eb2, 1, o_pad)

    out_pad = _edge_mlp(idx_v, idx_c, edge_pad, nproj,
                        w1e_p, b1_p, w2_p, b2_p, te=te)
    return out_pad[:E, :O]


# ----------------------------- pure-JAX reference ----------------------------
def _ref_forward(params, var_f, con_f, combined_edge_f, edge_index_var_con):
    def two_layer(x, w1, b1, w2, b2, final_relu):
        h = jnp.maximum(x @ w1 + b1, 0.0)
        y = h @ w2 + b2
        return jnp.maximum(y, 0.0) if final_relu else y

    v = two_layer(var_f, *params["var"], True)
    c = two_layer(con_f, *params["con"], True)
    x = jnp.concatenate(
        [combined_edge_f, v[edge_index_var_con[0], :], c[edge_index_var_con[1], :]],
        axis=1)
    return two_layer(x, *params["edge"], False)


if __name__ == "__main__":
    # Small, forward-consistent shapes.
    num_vars = 16
    num_cons = 12
    num_edges = 32
    num_var_channels = 8
    num_con_channels = 8
    num_input_edge_channels = 4
    num_hidden_channels = 32
    num_output_edge_channels = 4

    key = jax.random.PRNGKey(0)
    k_param, k_var, k_con, k_edge, k_iv, k_ic = jax.random.split(key, 6)

    params = init_edge_updater_params(
        k_param,
        num_input_edge_channels,
        num_hidden_channels,
        num_output_edge_channels,
        num_var_channels,
        num_con_channels,
    )

    var_f = jax.random.normal(k_var, (num_vars, num_var_channels), jnp.float32)
    con_f = jax.random.normal(k_con, (num_cons, num_con_channels), jnp.float32)
    combined_edge_f = jax.random.normal(
        k_edge, (num_edges, num_input_edge_channels), jnp.float32)
    edge_index_var_con = jnp.stack(
        [
            jax.random.randint(k_iv, (num_edges,), 0, num_vars, jnp.int32),
            jax.random.randint(k_ic, (num_edges,), 0, num_cons, jnp.int32),
        ],
        axis=0,
    )

    fwd = jax.jit(edge_updater_forward)
    out = fwd(params, var_f, con_f, combined_edge_f, edge_index_var_con)
    out = jax.block_until_ready(out)

    ref = _ref_forward(params, var_f, con_f, combined_edge_f, edge_index_var_con)
    assert out.shape == (num_edges, num_output_edge_channels)
    # atol/rtol slightly loosened: splitting the 68-wide first-layer contraction
    # into edge/var/con partial sums changes f32 accumulation order by a few ulp.
    assert jnp.allclose(out, ref, atol=1e-4, rtol=1e-4), float(
        jnp.max(jnp.abs(out - ref)))

    print("KERNEL_OK")
</pallas_src>

<mosaic_0001>
module attributes {stable_mosaic.version = 11 : i64} {
  func.func @_node_kernel(%arg0: i32, %arg1: i32, %arg2: memref<1x16x128xf32, #tpu.memory_space<vmem>>, %arg3: memref<1x128x128xf32, #tpu.memory_space<vmem>>, %arg4: memref<1x1x128xf32, #tpu.memory_space<vmem>>, %arg5: memref<1x128x128xf32, #tpu.memory_space<vmem>>, %arg6: memref<1x1x128xf32, #tpu.memory_space<vmem>>, %arg7: memref<1x128x128xf32, #tpu.memory_space<vmem>>, %arg8: memref<16x128xf32, #tpu.memory_space<vmem>>) attributes {dimension_semantics = [#tpu.dimension_semantics<parallel>, #tpu.dimension_semantics<parallel>], iteration_bounds = array<i64: 2, 1>, scalar_prefetch = 0 : i64, scratch_operands = 0 : i64, tpu.core_type = #tpu.core_type<tc>, window_params = [{transform_indices = @transform_0, window_bounds = array<i64: 1, 16, 128>}, {transform_indices = @transform_1, window_bounds = array<i64: 1, 128, 128>}, {transform_indices = @transform_2, window_bounds = array<i64: 1, 1, 128>}, {transform_indices = @transform_3, window_bounds = array<i64: 1, 128, 128>}, {transform_indices = @transform_4, window_bounds = array<i64: 1, 1, 128>}, {transform_indices = @transform_5, window_bounds = array<i64: 1, 128, 128>}, {transform_indices = @transform_6, window_bounds = array<i64: 16, 128>}]} {
    %c0 = arith.constant 0 : index
    %c0_0 = arith.constant 0 : index
    %c0_1 = arith.constant 0 : index
    %0 = vector.load %arg2[%c0, %c0_0, %c0_1] : memref<1x16x128xf32, #tpu.memory_space<vmem>>, vector<1x16x128xf32>
    %1 = vector.shape_cast %0 : vector<1x16x128xf32> to vector<16x128xf32>
    %c0_2 = arith.constant 0 : index
    %c0_3 = arith.constant 0 : index
    %c0_4 = arith.constant 0 : index
    %2 = vector.load %arg3[%c0_2, %c0_3, %c0_4] : memref<1x128x128xf32, #tpu.memory_space<vmem>>, vector<1x128x128xf32>
    %3 = vector.shape_cast %2 : vector<1x128x128xf32> to vector<128x128xf32>
    %cst = arith.constant dense<0.000000e+00> : vector<16x128xf32>
    %4 = tpu.matmul %1, %3, %cst {dimension_numbers = #tpu.dot_dimension_numbers<[1], [0], [0], [1], [0, 0, 1, 1], [], []>} : vector<16x128xf32>, vector<128x128xf32>, vector<16x128xf32> -> vector<16x128xf32>
    %c0_5 = arith.constant 0 : index
    %c0_6 = arith.constant 0 : index
    %c0_7 = arith.constant 0 : index
    %5 = vector.load %arg4[%c0_5, %c0_6, %c0_7] : memref<1x1x128xf32, #tpu.memory_space<vmem>>, vector<1x1x128xf32>
    %6 = vector.shape_cast %5 : vector<1x1x128xf32> to vector<1x128xf32>
    %7 = vector.broadcast %6 : vector<1x128xf32> to vector<16x128xf32>
    %8 = arith.addf %4, %7 : vector<16x128xf32>
    %cst_8 = arith.constant 0.000000e+00 : f32
    %9 = vector.broadcast %cst_8 : f32 to vector<16x128xf32>
    %10 = arith.maximumf %8, %9 : vector<16x128xf32>
    %c0_9 = arith.constant 0 : index
    %c0_10 = arith.constant 0 : index
    %c0_11 = arith.constant 0 : index
    %11 = vector.load %arg5[%c0_9, %c0_10, %c0_11] : memref<1x128x128xf32, #tpu.memory_space<vmem>>, vector<1x128x128xf32>
    %12 = vector.shape_cast %11 : vector<1x128x128xf32> to vector<128x128xf32>
    %cst_12 = arith.constant dense<0.000000e+00> : vector<16x128xf32>
    %13 = tpu.matmul %10, %12, %cst_12 {dimension_numbers = #tpu.dot_dimension_numbers<[1], [0], [0], [1], [0, 0, 1, 1], [], []>} : vector<16x128xf32>, vector<128x128xf32>, vector<16x128xf32> -> vector<16x128xf32>
    %c0_13 = arith.constant 0 : index
    %c0_14 = arith.constant 0 : index
    %c0_15 = arith.constant 0 : index
    %14 = vector.load %arg6[%c0_13, %c0_14, %c0_15] : memref<1x1x128xf32, #tpu.memory_space<vmem>>, vector<1x1x128xf32>
    %15 = vector.shape_cast %14 : vector<1x1x128xf32> to vector<1x128xf32>
    %16 = vector.broadcast %15 : vector<1x128xf32> to vector<16x128xf32>
    %17 = arith.addf %13, %16 : vector<16x128xf32>
    %cst_16 = arith.constant 0.000000e+00 : f32
    %18 = vector.broadcast %cst_16 : f32 to vector<16x128xf32>
    %19 = arith.maximumf %17, %18 : vector<16x128xf32>
    %c0_17 = arith.constant 0 : index
    %c0_18 = arith.constant 0 : index
    %c0_19 = arith.constant 0 : index
    %20 = vector.load %arg7[%c0_17, %c0_18, %c0_19] : memref<1x128x128xf32, #tpu.memory_space<vmem>>, vector<1x128x128xf32>
    %21 = vector.shape_cast %20 : vector<1x128x128xf32> to vector<128x128xf32>
    %cst_20 = arith.constant dense<0.000000e+00> : vector<16x128xf32>
    %22 = tpu.matmul %19, %21, %cst_20 {dimension_numbers = #tpu.dot_dimension_numbers<[1], [0], [0], [1], [0, 0, 1, 1], [], []>} : vector<16x128xf32>, vector<128x128xf32>, vector<16x128xf32> -> vector<16x128xf32>
    %c0_21 = arith.constant 0 : index
    %c0_22 = arith.constant 0 : index
    %23 = vector.load %arg8[%c0_21, %c0_22] : memref<16x128xf32, #tpu.memory_space<vmem>>, vector<16x128xf32>
    tpu.vector_store %arg8[%c0_21, %c0_22], %22 {strides = array<i32>} : memref<16x128xf32, #tpu.memory_space<vmem>>, vector<16x128xf32>,
    return
  }
  func.func @transform_0(%arg0: i32, %arg1: i32) -> (i32, i32, i32) {
    %c0_i32 = arith.constant 0 : i32
    %c0_i32_0 = arith.constant 0 : i32
    return %arg0, %arg1, %c0_i32 : i32, i32, i32
  }
  func.func @transform_1(%arg0: i32, %arg1: i32) -> (i32, i32, i32) {
    %c0_i32 = arith.constant 0 : i32
    %c0_i32_0 = arith.constant 0 : i32
    %c0_i32_1 = arith.constant 0 : i32
    return %arg0, %c0_i32, %c0_i32_0 : i32, i32, i32
  }
  func.func @transform_2(%arg0: i32, %arg1: i32) -> (i32, i32, i32) {
    %c0_i32 = arith.constant 0 : i32
    %c0_i32_0 = arith.constant 0 : i32
    %c0_i32_1 = arith.constant 0 : i32
    return %arg0, %c0_i32, %c0_i32_0 : i32, i32, i32
  }
  func.func @transform_3(%arg0: i32, %arg1: i32) -> (i32, i32, i32) {
    %c0_i32 = arith.constant 0 : i32
    %c0_i32_0 = arith.constant 0 : i32
    %c0_i32_1 = arith.constant 0 : i32
    return %arg0, %c0_i32, %c0_i32_0 : i32, i32, i32
  }
  func.func @transform_4(%arg0: i32, %arg1: i32) -> (i32, i32, i32) {
    %c0_i32 = arith.constant 0 : i32
    %c0_i32_0 = arith.constant 0 : i32
    %c0_i32_1 = arith.constant 0 : i32
    return %arg0, %c0_i32, %c0_i32_0 : i32, i32, i32
  }
  func.func @transform_5(%arg0: i32, %arg1: i32) -> (i32, i32, i32) {
    %c0_i32 = arith.constant 0 : i32
    %c0_i32_0 = arith.constant 0 : i32
    %c0_i32_1 = arith.constant 0 : i32
    return %arg0, %c0_i32, %c0_i32_0 : i32, i32, i32
  }
  func.func @transform_6(%arg0: i32, %arg1: i32) -> (i32, i32) {
    %c1_i32 = arith.constant 1 : i32
    %0 = arith.muli %arg0, %c1_i32 : i32
    %1 = arith.addi %0, %arg1 : i32
    %c0_i32 = arith.constant 0 : i32
    %c0_i32_0 = arith.constant 0 : i32
    return %1, %c0_i32 : i32, i32
  }
}

module attributes {stable_mosaic.version = 11 : i64} {
  func.func @_edge_kernel(%arg0: i32, %arg1: memref<128x1xi32, #tpu.memory_space<vmem>>, %arg2: memref<128x1xi32, #tpu.memory_space<vmem>>, %arg3: memref<128x128xf32, #tpu.memory_space<vmem>>, %arg4: memref<32x128xf32, #tpu.memory_space<vmem>>, %arg5: memref<128x128xf32, #tpu.memory_space<vmem>>, %arg6: memref<1x128xf32, #tpu.memory_space<vmem>>, %arg7: memref<128x128xf32, #tpu.memory_space<vmem>>, %arg8: memref<1x128xf32, #tpu.memory_space<vmem>>, %arg9: memref<128x128xf32, #tpu.memory_space<vmem>>) attributes {dimension_semantics = [#tpu.dimension_semantics<parallel>], iteration_bounds = array<i64: 1>, scalar_prefetch = 0 : i64, scratch_operands = 0 : i64, tpu.core_type = #tpu.core_type<tc>, window_params = [{transform_indices = @transform_0, window_bounds = array<i64: 128, 1>}, {transform_indices = @transform_1, window_bounds = array<i64: 128, 1>}, {transform_indices = @transform_2, window_bounds = array<i64: 128, 128>}, {pipeline_mode = #tpu.pipeline_mode<synchronous>, transform_indices = @transform_3, window_bounds = array<i64: 32, 128>}, {pipeline_mode = #tpu.pipeline_mode<synchronous>, transform_indices = @transform_4, window_bounds = array<i64: 128, 128>}, {pipeline_mode = #tpu.pipeline_mode<synchronous>, transform_indices = @transform_5, window_bounds = array<i64: 1, 128>}, {pipeline_mode = #tpu.pipeline_mode<synchronous>, transform_indices = @transform_6, window_bounds = array<i64: 128, 128>}, {pipeline_mode = #tpu.pipeline_mode<synchronous>, transform_indices = @transform_7, window_bounds = array<i64: 1, 128>}, {transform_indices = @transform_8, window_bounds = array<i64: 128, 128>}]} {
    %0 = tpu.iota {dimensions = array<i32: 1>} : vector<128x32xi32>
    %c0 = arith.constant 0 : index
    %c0_0 = arith.constant 0 : index
    %1 = vector.load %arg1[%c0, %c0_0] : memref<128x1xi32, #tpu.memory_space<vmem>>, vector<128x1xi32>
    %2 = vector.broadcast %1 : vector<128x1xi32> to vector<128x32xi32>
    %3 = arith.cmpi eq, %0, %2 : vector<128x32xi32>
    %c0_1 = arith.constant 0 : index
    %c0_2 = arith.constant 0 : index
    %4 = vector.load %arg2[%c0_1, %c0_2] : memref<128x1xi32, #tpu.memory_space<vmem>>, vector<128x1xi32>
    %5 = vector.broadcast %4 : vector<128x1xi32> to vector<128x32xi32>
    %6 = arith.cmpi eq, %0, %5 : vector<128x32xi32>
    %7 = arith.ori %3, %6 : vector<128x32xi1>
    %8 = arith.extui %7 : vector<128x32xi1> to vector<128x32xi32>
    %9 = arith.sitofp %8 : vector<128x32xi32> to vector<128x32xf32>
    %c0_3 = arith.constant 0 : index
    %c0_4 = arith.constant 0 : index
    %10 = vector.load %arg4[%c0_3, %c0_4] : memref<32x128xf32, #tpu.memory_space<vmem>>, vector<32x128xf32>
    %cst = arith.constant dense<0.000000e+00> : vector<128x128xf32>
    %11 = tpu.matmul %9, %10, %cst {dimension_numbers = #tpu.dot_dimension_numbers<[1], [0], [0], [1], [0, 0, 1, 1], [], []>} : vector<128x32xf32>, vector<32x128xf32>, vector<128x128xf32> -> vector<128x128xf32>
    %c0_5 = arith.constant 0 : index
    %c0_6 = arith.constant 0 : index
    %12 = vector.load %arg3[%c0_5, %c0_6] : memref<128x128xf32, #tpu.memory_space<vmem>>, vector<128x128xf32>
    %c0_7 = arith.constant 0 : index
    %c0_8 = arith.constant 0 : index
    %13 = vector.load %arg5[%c0_7, %c0_8] : memref<128x128xf32, #tpu.memory_space<vmem>>, vector<128x128xf32>
    %cst_9 = arith.constant dense<0.000000e+00> : vector<128x128xf32>
    %14 = tpu.matmul %12, %13, %cst_9 {dimension_numbers = #tpu.dot_dimension_numbers<[1], [0], [0], [1], [0, 0, 1, 1], [], []>} : vector<128x128xf32>, vector<128x128xf32>, vector<128x128xf32> -> vector<128x128xf32>
    %15 = arith.addf %14, %11 : vector<128x128xf32>
    %c0_10 = arith.constant 0 : index
    %c0_11 = arith.constant 0 : index
    %16 = vector.load %arg6[%c0_10, %c0_11] : memref<1x128xf32, #tpu.memory_space<vmem>>, vector<1x128xf32>
    %17 = vector.broadcast %16 : vector<1x128xf32> to vector<128x128xf32>
    %18 = arith.addf %15, %17 : vector<128x128xf32>
    %cst_12 = arith.constant 0.000000e+00 : f32
    %19 = vector.broadcast %cst_12 : f32 to vector<128x128xf32>
    %20 = arith.maximumf %18, %19 : vector<128x128xf32>
    %c0_13 = arith.constant 0 : index
    %c0_14 = arith.constant 0 : index
    %21 = vector.load %arg7[%c0_13, %c0_14] : memref<128x128xf32, #tpu.memory_space<vmem>>, vector<128x128xf32>
    %cst_15 = arith.constant dense<0.000000e+00> : vector<128x128xf32>
    %22 = tpu.matmul %20, %21, %cst_15 {dimension_numbers = #tpu.dot_dimension_numbers<[1], [0], [0], [1], [0, 0, 1, 1], [], []>} : vector<128x128xf32>, vector<128x128xf32>, vector<128x128xf32> -> vector<128x128xf32>
    %c0_16 = arith.constant 0 : index
    %c0_17 = arith.constant 0 : index
    %23 = vector.load %arg8[%c0_16, %c0_17] : memref<1x128xf32, #tpu.memory_space<vmem>>, vector<1x128xf32>
    %24 = vector.broadcast %23 : vector<1x128xf32> to vector<128x128xf32>
    %25 = arith.addf %22, %24 : vector<128x128xf32>
    %c0_18 = arith.constant 0 : index
    %c0_19 = arith.constant 0 : index
    %26 = vector.load %arg9[%c0_18, %c0_19] : memref<128x128xf32, #tpu.memory_space<vmem>>, vector<128x128xf32>
    tpu.vector_store %arg9[%c0_18, %c0_19], %25 {strides = array<i32>} : memref<128x128xf32, #tpu.memory_space<vmem>>, vector<128x128xf32>,
    return
  }
  func.func @transform_0(%arg0: i32) -> (i32, i32) {
    %c0_i32 = arith.constant 0 : i32
    %c0_i32_0 = arith.constant 0 : i32
    return %arg0, %c0_i32 : i32, i32
  }
  func.func @transform_1(%arg0: i32) -> (i32, i32) {
    %c0_i32 = arith.constant 0 : i32
    %c0_i32_0 = arith.constant 0 : i32
    return %arg0, %c0_i32 : i32, i32
  }
  func.func @transform_2(%arg0: i32) -> (i32, i32) {
    %c0_i32 = arith.constant 0 : i32
    %c0_i32_0 = arith.constant 0 : i32
    return %arg0, %c0_i32 : i32, i32
  }
  func.func @transform_3(%arg0: i32) -> (i32, i32) {
    %c0_i32 = arith.constant 0 : i32
    %c0_i32_0 = arith.constant 0 : i32
    %c0_i32_1 = arith.constant 0 : i32
    return %c0_i32, %c0_i32_0 : i32, i32
  }
  func.func @transform_4(%arg0: i32) -> (i32, i32) {
    %c0_i32 = arith.constant 0 : i32
    %c0_i32_0 = arith.constant 0 : i32
    %c0_i32_1 = arith.constant 0 : i32
    return %c0_i32, %c0_i32_0 : i32, i32
  }
  func.func @transform_5(%arg0: i32) -> (i32, i32) {
    %c0_i32 = arith.constant 0 : i32
    %c0_i32_0 = arith.constant 0 : i32
    %c0_i32_1 = arith.constant 0 : i32
    return %c0_i32, %c0_i32_0 : i32, i32
  }
  func.func @transform_6(%arg0: i32) -> (i32, i32) {
    %c0_i32 = arith.constant 0 : i32
    %c0_i32_0 = arith.constant 0 : i32
    %c0_i32_1 = arith.constant 0 : i32
    return %c0_i32, %c0_i32_0 : i32, i32
  }
  func.func @transform_7(%arg0: i32) -> (i32, i32) {
    %c0_i32 = arith.constant 0 : i32
    %c0_i32_0 = arith.constant 0 : i32
    %c0_i32_1 = arith.constant 0 : i32
    return %c0_i32, %c0_i32_0 : i32, i32
  }
  func.func @transform_8(%arg0: i32) -> (i32, i32) {
    %c0_i32 = arith.constant 0 : i32
    %c0_i32_0 = arith.constant 0 : i32
    return %arg0, %c0_i32 : i32, i32
  }
}

</mosaic_0001>

<llo_original>
// kernel: edge_updater_forward.2
$region0: #{edge_updater_forward.2}
  #allocation0 [shape = 'u32[]', space=smem, size = 0x4, offset = 0x4, fixed_abs, tag = 'smem constant byte address 0x4 - core index']
  #allocation1 [shape = 'u32[144,128]{1,0:T(1,128)}', space=vmem, size = 0x12000, scoped, tag = 'internal scratch']
  %s0 = inlined_call_operand.vmem [shape: f32[2,16,128], index: 0, kind: input, shape index: {}]
  %s1 = inlined_call_operand.vmem [shape: f32[2,128,128], index: 1, kind: input, shape index: {}]
  %s2 = inlined_call_operand.vmem [shape: f32[2,1,128], index: 2, kind: input, shape index: {}]
  %s3 = inlined_call_operand.vmem [shape: f32[2,128,128], index: 3, kind: input, shape index: {}]
  %s4 = inlined_call_operand.vmem [shape: f32[2,1,128], index: 4, kind: input, shape index: {}]
  %s5 = inlined_call_operand.vmem [shape: f32[2,128,128], index: 5, kind: input, shape index: {}]
  %s6 = inlined_call_operand.vmem [shape: f32[32,128], index: 6, kind: output, shape index: {}]
  %s7 = sld [smem:[#allocation0]]
  $region57: #{edge_updater_forward.2} parent=0
    _
  %s9 = ssub.s32 1, %s7
  %s10 = scalar_select 0, %s9, %s7
  loop: start=0, step=1, limit=4
  $region2: #{edge_updater_forward.2} parent=0 // loop_pre_header
    _
  $region3: #{edge_updater_forward.2} parent=0 // loop_header
    %s12 = sphi 0, %s16
    %p13 = scmp.ge.s32.totalorder %s12, 4
    %s19 = sphi 0, %s31
    %s20 = sphi 0, %s27
    %s21 = sphi 0, %s19
    %s22 = sphi 0, %s20
    %s23 = sphi 0, %s21
    %s24 = sphi 0, %s22
    %s36 = sphi 0, %s38
    %s39 = sphi 0, %s36
    %s40 = sphi 0, %s39
    %s56 = sphi 0, %s40
    %s62 = sphi 0, %s64
    %s65 = sphi 0, %s62
    %s66 = sphi 0, %s65
    %s82 = sphi 0, %s66
    %s88 = sphi 0, %s90
    %s91 = sphi 0, %s88
    %s92 = sphi 0, %s91
    %s108 = sphi 0, %s92
    %s114 = sphi 0, %s116
    %s117 = sphi 0, %s114
    %s118 = sphi 0, %s117
    %s134 = sphi 0, %s118
    %s140 = sphi 0, %s142
    %s143 = sphi 0, %s140
    %s144 = sphi 0, %s143
    %s160 = sphi 0, %s144
    %s166 = sphi 0, %s168
    %s169 = sphi 0, %s166
    %s170 = sphi 0, %s169
    %s186 = sphi 0, %s170
    %s194 = sphi 0, %s196
    %s197 = sphi 0, %s194
    %s198 = sphi 0, %s197
    %s214 = sphi 0, %s198
  $region4: #{edge_updater_forward.2} parent=0 // loop_header_branch
    %15 = sbr.rel (%p13) target = $region8
  $region5: #{edge_updater_forward.2} parent=0 // loop_body
    %s17 = ssub.s32 %s12, 1
    %s18 = ssub.s32 %s12, 2
    %s25 = sadd.s32 1, %s20
    %p26 = scmp.ge.s32.totalorder %s25, 1
    %s27 = scalar_select %p26, 0, %s25
    %s28 = sadd.s32 1, %s19
    %s29 = scalar_select %p26, %s28, %s19
    %p30 = scmp.ge.s32.totalorder %s29, 2
    %s31 = scalar_select %p30, 0, %s29
    %s32 = ssub.s32 %s19, %s31
    %s33 = ssub.s32 %s20, %s27
    %s34 = sor.u32 %s32, %s33
    %p35 = scmp.eq.s32.totalorder %s34, 0
    %s37 = sadd.s32 %s36, 1
    %s38 = scalar_select %p35, %s36, %s37
    %p41 = pneg %p35
    %p42 = scmp.eq.s32.totalorder %s12, 1
    %p43 = por %p41, %p42
    %p44 = scmp.ne.s32.totalorder %s36, %s39
    %p45 = scmp.eq.s32.totalorder %s12, 0
    %p46 = por %p44, %p45
    %p47 = scmp.ne.s32.totalorder %s36, %s39
    %p48 = scmp.eq.s32.totalorder %s17, 1
    %p49 = por %p47, %p48
    %p50 = scmp.ne.s32.totalorder %s39, %s40
    %p51 = scmp.eq.s32.totalorder %s17, 0
    %p52 = por %p50, %p51
    %p53 = scmp.ne.s32.totalorder %s39, %s40
    %p54 = scmp.eq.s32.totalorder %s18, 1
    %p55 = por %p53, %p54
    %p57 = scmp.ne.s32.totalorder %s40, %s56
    %p58 = scmp.eq.s32.totalorder %s18, 0
    %p59 = por %p57, %p58
    %s60 = ssub.s32 %s19, %s31
    %p61 = scmp.eq.s32.totalorder %s60, 0
    %s63 = sadd.s32 %s62, 1
    %s64 = scalar_select %p61, %s62, %s63
    %p67 = pneg %p61
    %p68 = scmp.eq.s32.totalorder %s12, 1
    %p69 = por %p67, %p68
    %p70 = scmp.ne.s32.totalorder %s62, %s65
    %p71 = scmp.eq.s32.totalorder %s12, 0
    %p72 = por %p70, %p71
    %p73 = scmp.ne.s32.totalorder %s62, %s65
    %p74 = scmp.eq.s32.totalorder %s17, 1
    %p75 = por %p73, %p74
    %p76 = scmp.ne.s32.totalorder %s65, %s66
    %p77 = scmp.eq.s32.totalorder %s17, 0
    %p78 = por %p76, %p77
    %p79 = scmp.ne.s32.totalorder %s65, %s66
    %p80 = scmp.eq.s32.totalorder %s18, 1
    %p81 = por %p79, %p80
    %p83 = scmp.ne.s32.totalorder %s66, %s82
    %p84 = scmp.eq.s32.totalorder %s18, 0
    %p85 = por %p83, %p84
    %s86 = ssub.s32 %s19, %s31
    %p87 = scmp.eq.s32.totalorder %s86, 0
    %s89 = sadd.s32 %s88, 1
    %s90 = scalar_select %p87, %s88, %s89
    %p93 = pneg %p87
    %p94 = scmp.eq.s32.totalorder %s12, 1
    %p95 = por %p93, %p94
    %p96 = scmp.ne.s32.totalorder %s88, %s91
    %p97 = scmp.eq.s32.totalorder %s12, 0
    %p98 = por %p96, %p97
    %p99 = scmp.ne.s32.totalorder %s88, %s91
    %p100 = scmp.eq.s32.totalorder %s17, 1
    %p101 = por %p99, %p100
    %p102 = scmp.ne.s32.totalorder %s91, %s92
    %p103 = scmp.eq.s32.totalorder %s17, 0
    %p104 = por %p102, %p103
    %p105 = scmp.ne.s32.totalorder %s91, %s92
    %p106 = scmp.eq.s32.totalorder %s18, 1
    %p107 = por %p105, %p106
    %p109 = scmp.ne.s32.totalorder %s92, %s108
    %p110 = scmp.eq.s32.totalorder %s18, 0
    %p111 = por %p109, %p110
    %s112 = ssub.s32 %s19, %s31
    %p113 = scmp.eq.s32.totalorder %s112, 0
    %s115 = sadd.s32 %s114, 1
    %s116 = scalar_select %p113, %s114, %s115
    %p119 = pneg %p113
    %p120 = scmp.eq.s32.totalorder %s12, 1
    %p121 = por %p119, %p120
    %p122 = scmp.ne.s32.totalorder %s114, %s117
    %p123 = scmp.eq.s32.totalorder %s12, 0
    %p124 = por %p122, %p123
    %p125 = scmp.ne.s32.totalorder %s114, %s117
    %p126 = scmp.eq.s32.totalorder %s17, 1
    %p127 = por %p125, %p126
    %p128 = scmp.ne.s32.totalorder %s117, %s118
    %p129 = scmp.eq.s32.totalorder %s17, 0
    %p130 = por %p128, %p129
    %p131 = scmp.ne.s32.totalorder %s117, %s118
    %p132 = scmp.eq.s32.totalorder %s18, 1
    %p133 = por %p131, %p132
    %p135 = scmp.ne.s32.totalorder %s118, %s134
    %p136 = scmp.eq.s32.totalorder %s18, 0
    %p137 = por %p135, %p136
    %s138 = ssub.s32 %s19, %s31
    %p139 = scmp.eq.s32.totalorder %s138, 0
    %s141 = sadd.s32 %s140, 1
    %s142 = scalar_select %p139, %s140, %s141
    %p145 = pneg %p139
    %p146 = scmp.eq.s32.totalorder %s12, 1
    %p147 = por %p145, %p146
    %p148 = scmp.ne.s32.totalorder %s140, %s143
    %p149 = scmp.eq.s32.totalorder %s12, 0
    %p150 = por %p148, %p149
    %p151 = scmp.ne.s32.totalorder %s140, %s143
    %p152 = scmp.eq.s32.totalorder %s17, 1
    %p153 = por %p151, %p152
    %p154 = scmp.ne.s32.totalorder %s143, %s144
    %p155 = scmp.eq.s32.totalorder %s17, 0
    %p156 = por %p154, %p155
    %p157 = scmp.ne.s32.totalorder %s143, %s144
    %p158 = scmp.eq.s32.totalorder %s18, 1
    %p159 = por %p157, %p158
    %p161 = scmp.ne.s32.totalorder %s144, %s160
    %p162 = scmp.eq.s32.totalorder %s18, 0
    %p163 = por %p161, %p162
    %s164 = ssub.s32 %s19, %s31
    %p165 = scmp.eq.s32.totalorder %s164, 0
    %s167 = sadd.s32 %s166, 1
    %s168 = scalar_select %p165, %s166, %s167
    %p171 = pneg %p165
    %p172 = scmp.eq.s32.totalorder %s12, 1
    %p173 = por %p171, %p172
    %p174 = scmp.ne.s32.totalorder %s166, %s169
    %p175 = scmp.eq.s32.totalorder %s12, 0
    %p176 = por %p174, %p175
    %p177 = scmp.ne.s32.totalorder %s166, %s169
    %p178 = scmp.eq.s32.totalorder %s17, 1
    %p179 = por %p177, %p178
    %p180 = scmp.ne.s32.totalorder %s169, %s170
    %p181 = scmp.eq.s32.totalorder %s17, 0
    %p182 = por %p180, %p181
    %p183 = scmp.ne.s32.totalorder %s169, %s170
    %p184 = scmp.eq.s32.totalorder %s18, 1
    %p185 = por %p183, %p184
    %p187 = scmp.ne.s32.totalorder %s170, %s186
    %p188 = scmp.eq.s32.totalorder %s18, 0
    %p189 = por %p187, %p188
    %s190 = sadd.s32 %s19, %s20
    %s191 = sadd.s32 %s31, %s27
    %s192 = ssub.s32 %s190, %s191
    %p193 = scmp.eq.s32.totalorder %s192, 0
    %s195 = sadd.s32 %s194, 1
    %s196 = scalar_select %p193, %s194, %s195
    %p199 = pneg %p193
    %p200 = scmp.eq.s32.totalorder %s12, 1
    %p201 = por %p199, %p200
    %p202 = scmp.ne.s32.totalorder %s194, %s197
    %p203 = scmp.eq.s32.totalorder %s12, 0
    %p204 = por %p202, %p203
    %p205 = scmp.ne.s32.totalorder %s194, %s197
    %p206 = scmp.eq.s32.totalorder %s17, 1
    %p207 = por %p205, %p206
    %p208 = scmp.ne.s32.totalorder %s197, %s198
    %p209 = scmp.eq.s32.totalorder %s17, 0
    %p210 = por %p208, %p209
    %p211 = scmp.ne.s32.totalorder %s197, %s198
    %p212 = scmp.eq.s32.totalorder %s18, 1
    %p213 = por %p211, %p212
    %p215 = scmp.ne.s32.totalorder %s198, %s214
    %p216 = scmp.eq.s32.totalorder %s18, 0
    %p217 = por %p215, %p216
    %p218 = scmp.le.s32.totalorder 1, %s12
    %p219 = scmp.lt.s32.totalorder %s12, 3
    %p220 = pnand %p218, %p219
    %p221 = pneg %p220
    // Predicated region
    $region9: #{edge_updater_forward.2} parent=5 // pred_check
      _
    $region10: #{edge_updater_forward.2} parent=5 // pred_check_branch
      %223 = sbr.rel (%p220) target = $region12
    $region11: #{edge_updater_forward.2} parent=5 // pred_region
      %s224 = ssub.s32 %s12, 1
    $region12: #{edge_updater_forward.2} parent=5 // pred_fallthru
      _
    %p225 = scmp.lt.s32.totalorder %s12, 2
    // Predicated region
    $region13: #{edge_updater_forward.2} parent=5 // pred_check
      %p226 = pneg %p225
    $region14: #{edge_updater_forward.2} parent=5 // pred_check_branch
      %228 = sbr.rel (%p226) target = $region16
    $region15: #{edge_updater_forward.2} parent=5 // pred_region
      // Predicated region
      $region17: #{edge_updater_forward.2} parent=15 // pred_check
        %p229 = pneg %p46
      $region18: #{edge_updater_forward.2} parent=15 // pred_check_branch
        %231 = sbr.rel (%p229) target = $region20
      $region19: #{edge_updater_forward.2} parent=15 // pred_region
        %s232 = smul.u32 2, %s20
        %p233 = scmp.lt.s32.totalorder %s19, 1
        %s234 = scalar_select %p233, %s19, 1
        %p235 = scmp.lt.s32.totalorder %s232, 1
        %s236 = scalar_select %p235, %s232, 1
        %s237 = smul.addr %s234, 2
        %s238 = sadd.s32 %s236, %s237
        %s239 = smul.addr %s238, 8
        %s240 = scalar_lea.vmem %s0, %s239
        %s241 = smul.u32 2, %s20
      $region20: #{edge_updater_forward.2} parent=15 // pred_fallthru
        _
      // Predicated region
      $region21: #{edge_updater_forward.2} parent=15 // pred_check
        %p242 = pneg %p72
      $region22: #{edge_updater_forward.2} parent=15 // pred_check_branch
        %244 = sbr.rel (%p242) target = $region24
      $region23: #{edge_updater_forward.2} parent=15 // pred_region
        %p245 = scmp.lt.s32.totalorder %s19, 1
        %s246 = scalar_select %p245, %s19, 1
        %s247 = smul.addr %s246, 16
        %s248 = smul.addr %s247, 8
        %s249 = scalar_lea.vmem %s1, %s248
      $region24: #{edge_updater_forward.2} parent=15 // pred_fallthru
        _
      // Predicated region
      $region25: #{edge_updater_forward.2} parent=15 // pred_check
        %p250 = pneg %p98
      $region26: #{edge_updater_forward.2} parent=15 // pred_check_branch
        %252 = sbr.rel (%p250) target = $region28
      $region27: #{edge_updater_forward.2} parent=15 // pred_region
        %p253 = scmp.lt.s32.totalorder %s19, 1
        %s254 = scalar_select %p253, %s19, 1
        %s255 = scalar_lea.vmem %s2, %s254
      $region28: #{edge_updater_forward.2} parent=15 // pred_fallthru
        _
      // Predicated region
      $region29: #{edge_updater_forward.2} parent=15 // pred_check
        %p256 = pneg %p124
      $region30: #{edge_updater_forward.2} parent=15 // pred_check_branch
        %258 = sbr.rel (%p256) target = $region32
      $region31: #{edge_updater_forward.2} parent=15 // pred_region
        %p259 = scmp.lt.s32.totalorder %s19, 1
        %s260 = scalar_select %p259, %s19, 1
        %s261 = smul.addr %s260, 16
        %s262 = smul.addr %s261, 8
        %s263 = scalar_lea.vmem %s3, %s262
      $region32: #{edge_updater_forward.2} parent=15 // pred_fallthru
        _
      // Predicated region
      $region33: #{edge_updater_forward.2} parent=15 // pred_check
        %p264 = pneg %p150
      $region34: #{edge_updater_forward.2} parent=15 // pred_check_branch
        %266 = sbr.rel (%p264) target = $region36
      $region35: #{edge_updater_forward.2} parent=15 // pred_region
        %p267 = scmp.lt.s32.totalorder %s19, 1
        %s268 = scalar_select %p267, %s19, 1
        %s269 = scalar_lea.vmem %s4, %s268
      $region36: #{edge_updater_forward.2} parent=15 // pred_fallthru
        _
      // Predicated region
      $region37: #{edge_updater_forward.2} parent=15 // pred_check
        %p270 = pneg %p176
      $region38: #{edge_updater_forward.2} parent=15 // pred_check_branch
        %272 = sbr.rel (%p270) target = $region40
      $region39: #{edge_updater_forward.2} parent=15 // pred_region
        %p273 = scmp.lt.s32.totalorder %s19, 1
        %s274 = scalar_select %p273, %s19, 1
        %s275 = smul.addr %s274, 16
        %s276 = smul.addr %s275, 8
        %s277 = scalar_lea.vmem %s5, %s276
      $region40: #{edge_updater_forward.2} parent=15 // pred_fallthru
        _
    $region16: #{edge_updater_forward.2} parent=5 // pred_fallthru
      _
    %p278 = scmp.le.s32.totalorder 1, %s12
    %p279 = scmp.lt.s32.totalorder %s12, 3
    %p280 = pnand %p278, %p279
    %p281 = pneg %p280
    // Predicated region
    $region41: #{edge_updater_forward.2} parent=5 // pred_check
      _
    $region42: #{edge_updater_forward.2} parent=5 // pred_check_branch
      %283 = sbr.rel (%p280) target = $region44
    $region43: #{edge_updater_forward.2} parent=5 // pred_region
      %s284 = ssub.s32 %s12, 1
      %s285 = smul.u32 2, %s22
      %p286 = scmp.lt.s32.totalorder %s21, 1
      %s287 = scalar_select %p286, %s21, 1
      %p288 = scmp.lt.s32.totalorder %s285, 1
      %s289 = scalar_select %p288, %s285, 1
      %s290 = smul.addr %s287, 2
      %s291 = sadd.s32 %s289, %s290
      %s292 = smul.addr %s291, 8
      %s293 = scalar_lea.vmem %s0, %s292
      %p294 = pneg %p52
      %p295 = pneg %p49
      %p296 = scmp.lt.s32.totalorder %s21, 1
      %s297 = scalar_select %p296, %s21, 1
      %s298 = smul.addr %s297, 16
      %s299 = smul.addr %s298, 8
      %s300 = scalar_lea.vmem %s1, %s299
      %p301 = pneg %p78
      %p302 = pneg %p75
      %p303 = scmp.lt.s32.totalorder %s21, 1
      %s304 = scalar_select %p303, %s21, 1
      %s305 = scalar_lea.vmem %s2, %s304
      %p306 = pneg %p104
      %p307 = pneg %p101
      %p308 = scmp.lt.s32.totalorder %s21, 1
      %s309 = scalar_select %p308, %s21, 1
      %s310 = smul.addr %s309, 16
      %s311 = smul.addr %s310, 8
      %s312 = scalar_lea.vmem %s3, %s311
      %p313 = pneg %p130
      %p314 = pneg %p127
      %p315 = scmp.lt.s32.totalorder %s21, 1
      %s316 = scalar_select %p315, %s21, 1
      %s317 = scalar_lea.vmem %s4, %s316
      %p318 = pneg %p156
      %p319 = pneg %p153
      %p320 = scmp.lt.s32.totalorder %s21, 1
      %s321 = scalar_select %p320, %s21, 1
      %s322 = smul.addr %s321, 16
      %s323 = smul.addr %s322, 8
      %s324 = scalar_lea.vmem %s5, %s323
      %p325 = pneg %p182
      %p326 = pneg %p179
      %p327 = pneg %p210
      %p328 = pneg %p207
      %s329 = sadd.s32 %s21, %s22
      %s330 = smul.u32 2, %s329
      %p331 = scmp.lt.s32.totalorder %s330, 3
      %s332 = scalar_select %p331, %s330, 3
      %s333 = smul.addr %s332, 8
      %s334 = scalar_lea.vmem %s6, %s333
      %s335 = smul.u32 2, %s22
      %p336 = scmp.lt.s32.totalorder %s21, 1
      %s337 = scalar_select %p336, %s21, 1
      %p338 = scmp.lt.s32.totalorder %s335, 1
      %s339 = scalar_select %p338, %s335, 1
      %s340 = smul.addr %s337, 2
      %s341 = sadd.s32 %s339, %s340
      %s342 = smul.addr %s341, 8
      %s343 = scalar_lea.vmem %s0, %s342
      %s344 = smul.u32 2, %s22
      %p345 = scmp.lt.s32.totalorder %s21, 1
      %s346 = scalar_select %p345, %s21, 1
      %s347 = smul.addr %s346, 16
      %s348 = smul.addr %s347, 8
      %s349 = scalar_lea.vmem %s1, %s348
      %p350 = scmp.lt.s32.totalorder %s21, 1
      %s351 = scalar_select %p350, %s21, 1
      %s352 = scalar_lea.vmem %s2, %s351
      %p353 = scmp.lt.s32.totalorder %s21, 1
      %s354 = scalar_select %p353, %s21, 1
      %s355 = smul.addr %s354, 16
      %s356 = smul.addr %s355, 8
      %s357 = scalar_lea.vmem %s3, %s356
      %p358 = scmp.lt.s32.totalorder %s21, 1
      %s359 = scalar_select %p358, %s21, 1
      %s360 = scalar_lea.vmem %s4, %s359
      %p361 = scmp.lt.s32.totalorder %s21, 1
      %s362 = scalar_select %p361, %s21, 1
      %s363 = smul.addr %s362, 16
      %s364 = smul.addr %s363, 8
      %s365 = scalar_lea.vmem %s5, %s364
      %s366 = sadd.s32 %s21, %s22
      %s367 = smul.u32 2, %s366
      %p368 = scmp.lt.s32.totalorder %s367, 3
      %s369 = scalar_select %p368, %s367, 3
      %s370 = smul.addr %s369, 8
      %s371 = scalar_lea.vmem %s6, %s370
      %s372 = sadd.s32 %s21, %s22
      %s373 = smul.u32 2, %s372
      %v374 = vld [vmem:[%s343] sm:$0xff]
      %v375 = vld [vmem:[%s343 + $0x8] sm:$0xff]
      %v376 = vld [vmem:[%s349] sm:$0xff]
      %v377 = vld [vmem:[%s349 + $0x8] sm:$0xff]
      %v378 = vld [vmem:[%s349 + $0x10] sm:$0xff]
      %v379 = vld [vmem:[%s349 + $0x18] sm:$0xff]
      %v380 = vld [vmem:[%s349 + $0x20] sm:$0xff]
      %v381 = vld [vmem:[%s349 + $0x28] sm:$0xff]
      %v382 = vld [vmem:[%s349 + $0x30] sm:$0xff]
      %v383 = vld [vmem:[%s349 + $0x38] sm:$0xff]
      %v384 = vld [vmem:[%s349 + $0x40] sm:$0xff]
      %v385 = vld [vmem:[%s349 + $0x48] sm:$0xff]
      %v386 = vld [vmem:[%s349 + $0x50] sm:$0xff]
      %v387 = vld [vmem:[%s349 + $0x58] sm:$0xff]
      %v388 = vld [vmem:[%s349 + $0x60] sm:$0xff]
      %v389 = vld [vmem:[%s349 + $0x68] sm:$0xff]
      %v390 = vld [vmem:[%s349 + $0x70] sm:$0xff]
      %v391 = vld [vmem:[%s349 + $0x78] sm:$0xff]
      %v392 = vld [vmem:[%s352] sm:$0x1]
      %v394 = vlaneseq
      %v395 = vshrl.u32 %v394, 7
      %v396 = vsub.s32 0, %v395
      %v397 = vrot.slane %v392, %v396
      %399 = vmatprep.subr.mxu0 0.0
      %400 = vmatpush1.msra.mxu0 %v391
      %401 = vmatprep.subr.mxu0 0.0
      %402 = vmatpush1.msra.mxu0 %v390
      %403 = vmatprep.subr.mxu0 0.0
      %404 = vmatpush1.msra.mxu0 %v389
      %405 = vmatprep.subr.mxu0 0.0
      %406 = vmatpush1.msra.mxu0 %v388
      %407 = vmatprep.subr.mxu0 0.0
      %408 = vmatpush1.msra.mxu0 %v387
      %409 = vmatprep.subr.mxu0 0.0
      %410 = vmatpush1.msra.mxu0 %v386
      %411 = vmatprep.subr.mxu0 0.0
      %412 = vmatpush1.msra.mxu0 %v385
      %413 = vmatprep.subr.mxu0 0.0
      %414 = vmatpush1.msra.mxu0 %v384
      %415 = vmatprep.subr.mxu0 0.0
      %416 = vmatpush1.msra.mxu0 %v383
      %417 = vmatprep.subr.mxu0 0.0
      %418 = vmatpush1.msra.mxu0 %v382
      %419 = vmatprep.subr.mxu0 0.0
      %420 = vmatpush1.msra.mxu0 %v381
      %421 = vmatprep.subr.mxu0 0.0
      %422 = vmatpush1.msra.mxu0 %v380
      %423 = vmatprep.subr.mxu0 0.0
      %424 = vmatpush1.msra.mxu0 %v379
      %425 = vmatprep.subr.mxu0 0.0
      %426 = vmatpush1.msra.mxu0 %v378
      %427 = vmatprep.subr.mxu0 0.0
      %428 = vmatpush1.msra.mxu0 %v377
      %429 = vmatprep.subr.mxu0 0.0
      %430 = vmatpush1.msra.mxu0 %v376
      %431 = vmatprep.subr.mxu0 0.0
      %432 = vmatpush2.msra.mxu0 0.0
      %433 = vmatprep.subr.mxu0 0.0
      %434 = vmatpush2.msra.mxu0 0.0
      %435 = vmatprep.subr.mxu0 0.0
      %436 = vmatpush2.msra.mxu0 0.0
      %437 = vmatprep.subr.mxu0 0.0
      %438 = vmatpush2.msra.mxu0 0.0
      %439 = vmatprep.subr.mxu0 0.0
      %440 = vmatpush2.msra.mxu0 0.0
      %441 = vmatprep.subr.mxu0 0.0
      %442 = vmatpush2.msra.mxu0 0.0
      %443 = vmatprep.subr.mxu0 0.0
      %444 = vmatpush2.msra.mxu0 0.0
      %445 = vmatprep.subr.mxu0 0.0
      %446 = vmatpush2.msra.mxu0 0.0
      %447 = vmatprep.subr.mxu0 0.0
      %448 = vmatpush2.msra.mxu0 0.0
      %449 = vmatprep.subr.mxu0 0.0
      %450 = vmatpush2.msra.mxu0 0.0
      %451 = vmatprep.subr.mxu0 0.0
      %452 = vmatpush2.msra.mxu0 0.0
      %453 = vmatprep.subr.mxu0 0.0
      %454 = vmatpush2.msra.mxu0 0.0
      %455 = vmatprep.subr.mxu0 0.0
      %456 = vmatpush2.msra.mxu0 0.0
      %457 = vmatprep.subr.mxu0 0.0
      %458 = vmatpush2.msra.mxu0 0.0
      %459 = vmatprep.subr.mxu0 0.0
      %460 = vmatpush2.msra.mxu0 0.0
      %461 = vmatprep.subr.mxu0 0.0
      %462 = vmatpush2.msra.mxu0 0.0
      %463 = vmatprep.mubr.f32.mxu0 0.0
      %464 = vmatmul.mubr.f32.gmra.mxu0 %v374
      %v465 = vpop.f32.mrf.mxu0
      %v466 = vadd.f32 %v397, %v465
      %v467 = vpop.f32.mrf.mxu0
      %468 = vmatprep.mubr.f32.mxu0 0.0
      %469 = vmatmul.mubr.f32.gmra.mxu0 %v375
      %v470 = vpop.f32.mrf.mxu0
      %v471 = vadd.f32 %v397, %v470
      %v472 = vpop.f32.mrf.mxu0
      %473 = vdwg.mxu0
      %v474 = vmax.f32 %v466, 0.0
      %v475 = vmax.f32 %v471, 0.0
      %v476 = vld [vmem:[%s357] sm:$0xff]
      %v477 = vld [vmem:[%s357 + $0x8] sm:$0xff]
      %v478 = vld [vmem:[%s357 + $0x10] sm:$0xff]
      %v479 = vld [vmem:[%s357 + $0x18] sm:$0xff]
      %v480 = vld [vmem:[%s357 + $0x20] sm:$0xff]
      %v481 = vld [vmem:[%s357 + $0x28] sm:$0xff]
      %v482 = vld [vmem:[%s357 + $0x30] sm:$0xff]
      %v483 = vld [vmem:[%s357 + $0x38] sm:$0xff]
      %v484 = vld [vmem:[%s357 + $0x40] sm:$0xff]
      %v485 = vld [vmem:[%s357 + $0x48] sm:$0xff]
      %v486 = vld [vmem:[%s357 + $0x50] sm:$0xff]
      %v487 = vld [vmem:[%s357 + $0x58] sm:$0xff]
      %v488 = vld [vmem:[%s357 + $0x60] sm:$0xff]
      %v489 = vld [vmem:[%s357 + $0x68] sm:$0xff]
      %v490 = vld [vmem:[%s357 + $0x70] sm:$0xff]
      %v491 = vld [vmem:[%s357 + $0x78] sm:$0xff]
      %v492 = vld [vmem:[%s360] sm:$0x1]
      %v494 = vlaneseq
      %v495 = vshrl.u32 %v494, 7
      %v496 = vsub.s32 0, %v495
      %v497 = vrot.slane %v492, %v496
      %499 = vmatprep.subr.mxu0 0.0
      %500 = vmatpush1.msra.mxu0 %v491
      %501 = vmatprep.subr.mxu0 0.0
      %502 = vmatpush1.msra.mxu0 %v490
      %503 = vmatprep.subr.mxu0 0.0
      %504 = vmatpush1.msra.mxu0 %v489
      %505 = vmatprep.subr.mxu0 0.0
      %506 = vmatpush1.msra.mxu0 %v488
      %507 = vmatprep.subr.mxu0 0.0
      %508 = vmatpush1.msra.mxu0 %v487
      %509 = vmatprep.subr.mxu0 0.0
      %510 = vmatpush1.msra.mxu0 %v486
      %511 = vmatprep.subr.mxu0 0.0
      %512 = vmatpush1.msra.mxu0 %v485
      %513 = vmatprep.subr.mxu0 0.0
      %514 = vmatpush1.msra.mxu0 %v484
      %515 = vmatprep.subr.mxu0 0.0
      %516 = vmatpush1.msra.mxu0 %v483
      %517 = vmatprep.subr.mxu0 0.0
      %518 = vmatpush1.msra.mxu0 %v482
      %519 = vmatprep.subr.mxu0 0.0
      %520 = vmatpush1.msra.mxu0 %v481
      %521 = vmatprep.subr.mxu0 0.0
      %522 = vmatpush1.msra.mxu0 %v480
      %523 = vmatprep.subr.mxu0 0.0
      %524 = vmatpush1.msra.mxu0 %v479
      %525 = vmatprep.subr.mxu0 0.0
      %526 = vmatpush1.msra.mxu0 %v478
      %527 = vmatprep.subr.mxu0 0.0
      %528 = vmatpush1.msra.mxu0 %v477
      %529 = vmatprep.subr.mxu0 0.0
      %530 = vmatpush1.msra.mxu0 %v476
      %531 = vmatprep.subr.mxu0 0.0
      %532 = vmatpush2.msra.mxu0 0.0
      %533 = vmatprep.subr.mxu0 0.0
      %534 = vmatpush2.msra.mxu0 0.0
      %535 = vmatprep.subr.mxu0 0.0
      %536 = vmatpush2.msra.mxu0 0.0
      %537 = vmatprep.subr.mxu0 0.0
      %538 = vmatpush2.msra.mxu0 0.0
      %539 = vmatprep.subr.mxu0 0.0
      %540 = vmatpush2.msra.mxu0 0.0
      %541 = vmatprep.subr.mxu0 0.0
      %542 = vmatpush2.msra.mxu0 0.0
      %543 = vmatprep.subr.mxu0 0.0
      %544 = vmatpush2.msra.mxu0 0.0
      %545 = vmatprep.subr.mxu0 0.0
      %546 = vmatpush2.msra.mxu0 0.0
      %547 = vmatprep.subr.mxu0 0.0
      %548 = vmatpush2.msra.mxu0 0.0
      %549 = vmatprep.subr.mxu0 0.0
      %550 = vmatpush2.msra.mxu0 0.0
      %551 = vmatprep.subr.mxu0 0.0
      %552 = vmatpush2.msra.mxu0 0.0
      %553 = vmatprep.subr.mxu0 0.0
      %554 = vmatpush2.msra.mxu0 0.0
      %555 = vmatprep.subr.mxu0 0.0
      %556 = vmatpush2.msra.mxu0 0.0
      %557 = vmatprep.subr.mxu0 0.0
      %558 = vmatpush2.msra.mxu0 0.0
      %559 = vmatprep.subr.mxu0 0.0
      %560 = vmatpush2.msra.mxu0 0.0
      %561 = vmatprep.subr.mxu0 0.0
      %562 = vmatpush2.msra.mxu0 0.0
      %563 = vmatprep.mubr.f32.mxu0 0.0
      %564 = vmatmul.mubr.f32.gmra.mxu0 %v474
      %v565 = vpop.f32.mrf.mxu0
      %v566 = vadd.f32 %v497, %v565
      %v567 = vpop.f32.mrf.mxu0
      %568 = vmatprep.mubr.f32.mxu0 0.0
      %569 = vmatmul.mubr.f32.gmra.mxu0 %v475
      %v570 = vpop.f32.mrf.mxu0
      %v571 = vadd.f32 %v497, %v570
      %v572 = vpop.f32.mrf.mxu0
      %573 = vdwg.mxu0
      %v574 = vmax.f32 %v566, 0.0
      %v575 = vmax.f32 %v571, 0.0
      %v576 = vld [vmem:[%s365] sm:$0xff]
      %v577 = vld [vmem:[%s365 + $0x8] sm:$0xff]
      %v578 = vld [vmem:[%s365 + $0x10] sm:$0xff]
      %v579 = vld [vmem:[%s365 + $0x18] sm:$0xff]
      %v580 = vld [vmem:[%s365 + $0x20] sm:$0xff]
      %v581 = vld [vmem:[%s365 + $0x28] sm:$0xff]
      %v582 = vld [vmem:[%s365 + $0x30] sm:$0xff]
      %v583 = vld [vmem:[%s365 + $0x38] sm:$0xff]
      %v584 = vld [vmem:[%s365 + $0x40] sm:$0xff]
      %v585 = vld [vmem:[%s365 + $0x48] sm:$0xff]
      %v586 = vld [vmem:[%s365 + $0x50] sm:$0xff]
      %v587 = vld [vmem:[%s365 + $0x58] sm:$0xff]
      %v588 = vld [vmem:[%s365 + $0x60] sm:$0xff]
      %v589 = vld [vmem:[%s365 + $0x68] sm:$0xff]
      %v590 = vld [vmem:[%s365 + $0x70] sm:$0xff]
      %v591 = vld [vmem:[%s365 + $0x78] sm:$0xff]
      %592 = vmatprep.subr.mxu0 0.0
      %593 = vmatpush1.msra.mxu0 %v591
      %594 = vmatprep.subr.mxu0 0.0
      %595 = vmatpush1.msra.mxu0 %v590
      %596 = vmatprep.subr.mxu0 0.0
      %597 = vmatpush1.msra.mxu0 %v589
      %598 = vmatprep.subr.mxu0 0.0
      %599 = vmatpush1.msra.mxu0 %v588
      %600 = vmatprep.subr.mxu0 0.0
      %601 = vmatpush1.msra.mxu0 %v587
      %602 = vmatprep.subr.mxu0 0.0
      %603 = vmatpush1.msra.mxu0 %v586
      %604 = vmatprep.subr.mxu0 0.0
      %605 = vmatpush1.msra.mxu0 %v585
      %606 = vmatprep.subr.mxu0 0.0
      %607 = vmatpush1.msra.mxu0 %v584
      %608 = vmatprep.subr.mxu0 0.0
      %609 = vmatpush1.msra.mxu0 %v583
      %610 = vmatprep.subr.mxu0 0.0
      %611 = vmatpush1.msra.mxu0 %v582
      %612 = vmatprep.subr.mxu0 0.0
      %613 = vmatpush1.msra.mxu0 %v581
      %614 = vmatprep.subr.mxu0 0.0
      %615 = vmatpush1.msra.mxu0 %v580
      %616 = vmatprep.subr.mxu0 0.0
      %617 = vmatpush1.msra.mxu0 %v579
      %618 = vmatprep.subr.mxu0 0.0
      %619 = vmatpush1.msra.mxu0 %v578
      %620 = vmatprep.subr.mxu0 0.0
      %621 = vmatpush1.msra.mxu0 %v577
      %622 = vmatprep.subr.mxu0 0.0
      %623 = vmatpush1.msra.mxu0 %v576
      %624 = vmatprep.subr.mxu0 0.0
      %625 = vmatpush2.msra.mxu0 0.0
      %626 = vmatprep.subr.mxu0 0.0
      %627 = vmatpush2.msra.mxu0 0.0
      %628 = vmatprep.subr.mxu0 0.0
      %629 = vmatpush2.msra.mxu0 0.0
      %630 = vmatprep.subr.mxu0 0.0
      %631 = vmatpush2.msra.mxu0 0.0
      %632 = vmatprep.subr.mxu0 0.0
      %633 = vmatpush2.msra.mxu0 0.0
      %634 = vmatprep.subr.mxu0 0.0
      %635 = vmatpush2.msra.mxu0 0.0
      %636 = vmatprep.subr.mxu0 0.0
      %637 = vmatpush2.msra.mxu0 0.0
      %638 = vmatprep.subr.mxu0 0.0
      %639 = vmatpush2.msra.mxu0 0.0
      %640 = vmatprep.subr.mxu0 0.0
      %641 = vmatpush2.msra.mxu0 0.0
      %642 = vmatprep.subr.mxu0 0.0
      %643 = vmatpush2.msra.mxu0 0.0
      %644 = vmatprep.subr.mxu0 0.0
      %645 = vmatpush2.msra.mxu0 0.0
      %646 = vmatprep.subr.mxu0 0.0
      %647 = vmatpush2.msra.mxu0 0.0
      %648 = vmatprep.subr.mxu0 0.0
      %649 = vmatpush2.msra.mxu0 0.0
      %650 = vmatprep.subr.mxu0 0.0
      %651 = vmatpush2.msra.mxu0 0.0
      %652 = vmatprep.subr.mxu0 0.0
      %653 = vmatpush2.msra.mxu0 0.0
      %654 = vmatprep.subr.mxu0 0.0
      %655 = vmatpush2.msra.mxu0 0.0
      %656 = vmatprep.mubr.f32.mxu0 0.0
      %657 = vmatmul.mubr.f32.gmra.mxu0 %v574
      %v658 = vpop.f32.mrf.mxu0
      %v659 = vadd.f32 0.0, %v658
      %v660 = vpop.f32.mrf.mxu0
      %661 = vmatprep.mubr.f32.mxu0 0.0
      %662 = vmatmul.mubr.f32.gmra.mxu0 %v575
      %v663 = vpop.f32.mrf.mxu0
      %v664 = vadd.f32 0.0, %v663
      %v665 = vpop.f32.mrf.mxu0
      %666 = vdwg.mxu0
      %667 = vst [vmem:[%s371] sm:$0xff] %v659
      %668 = vst [vmem:[%s371 + $0x8] sm:$0xff] %v664
      %s669 = sadd.s32 %s21, %s22
      %s670 = smul.u32 2, %s669
      %p671 = scmp.lt.s32.totalorder %s670, 3
      %s672 = scalar_select %p671, %s670, 3
      %s673 = smul.addr %s672, 8
      %s674 = scalar_lea.vmem %s6, %s673
      // Predicated region
      $region45: #{edge_updater_forward.2} parent=43 // pred_check
        %p675 = pneg %p207
      $region46: #{edge_updater_forward.2} parent=43 // pred_check_branch
        %677 = sbr.rel (%p675) target = $region48
      $region47: #{edge_updater_forward.2} parent=43 // pred_region
        %s678 = sadd.s32 %s21, %s22
        %s679 = smul.u32 2, %s678
      $region48: #{edge_updater_forward.2} parent=43 // pred_fallthru
        _
    $region44: #{edge_updater_forward.2} parent=5 // pred_fallthru
      _
    %p680 = scmp.le.s32.totalorder 2, %s12
    // Predicated region
    $region49: #{edge_updater_forward.2} parent=5 // pred_check
      %p681 = pneg %p680
    $region50: #{edge_updater_forward.2} parent=5 // pred_check_branch
      %683 = sbr.rel (%p681) target = $region52
    $region51: #{edge_updater_forward.2} parent=5 // pred_region
      %s684 = ssub.s32 %s12, 2
      // Predicated region
      $region53: #{edge_updater_forward.2} parent=51 // pred_check
        %p685 = pneg %p213
      $region54: #{edge_updater_forward.2} parent=51 // pred_check_branch
        %687 = sbr.rel (%p685) target = $region56
      $region55: #{edge_updater_forward.2} parent=51 // pred_region
        %s688 = sadd.s32 %s23, %s24
        %s689 = smul.u32 2, %s688
        %p690 = scmp.lt.s32.totalorder %s689, 3
        %s691 = scalar_select %p690, %s689, 3
        %s692 = smul.addr %s691, 8
        %s693 = scalar_lea.vmem %s6, %s692
      $region56: #{edge_updater_forward.2} parent=51 // pred_fallthru
        _
    $region52: #{edge_updater_forward.2} parent=5 // pred_fallthru
      _
  $region6: #{edge_updater_forward.2} parent=0 // loop_footer
    %s16 = sadd.s32 1, %s12
  $region7: #{edge_updater_forward.2} parent=0 // loop_footer_branch
    %11 = sbr.rel target = $region3
  $region8: #{edge_updater_forward.2} parent=0 // loop_exit
    _

// kernel: edge_updater_forward.3
$region0: #{edge_updater_forward.3}
  #allocation0 [shape = 'u32[]', space=smem, size = 0x4, offset = 0x4, fixed_abs, tag = 'smem constant byte address 0x4 - core index']
  #allocation1 [shape = 'u32[144,128]{1,0:T(1,128)}', space=vmem, size = 0x12000, scoped, tag = 'internal scratch']
  %s0 = inlined_call_operand.vmem [shape: s32[128,1], index: 0, kind: input, shape index: {}]
  %s1 = inlined_call_operand.vmem [shape: s32[128,1], index: 1, kind: input, shape index: {}]
  %s2 = inlined_call_operand.vmem [shape: f32[128,128], index: 2, kind: input, shape index: {}]
  %s3 = inlined_call_operand.vmem [shape: f32[32,128], index: 3, kind: input, shape index: {}]
  %s4 = inlined_call_operand.vmem [shape: f32[128,128], index: 4, kind: input, shape index: {}]
  %s5 = inlined_call_operand.vmem [shape: f32[1,128], index: 5, kind: input, shape index: {}]
  %s6 = inlined_call_operand.vmem [shape: f32[128,128], index: 6, kind: input, shape index: {}]
  %s7 = inlined_call_operand.vmem [shape: f32[1,128], index: 7, kind: input, shape index: {}]
  %s8 = inlined_call_operand.vmem [shape: f32[128,128], index: 8, kind: output, shape index: {}]
  %s9 = sld [smem:[#allocation0]]
  $region42: #{edge_updater_forward.3} parent=0
    _
  %s11 = ssub.s32 1, %s9
  %s12 = scalar_select 0, %s11, %s9
  // Predicated region
  $region2: #{edge_updater_forward.3} parent=0 // pred_check
    _
  $region3: #{edge_updater_forward.3} parent=0 // pred_check_branch
    %14 = sbr.rel (0) target = $region5
  $region4: #{edge_updater_forward.3} parent=0 // pred_region
    _
  $region5: #{edge_updater_forward.3} parent=0 // pred_fallthru
    _
  // Predicated region
  $region6: #{edge_updater_forward.3} parent=0 // pred_check
    _
  $region7: #{edge_updater_forward.3} parent=0 // pred_check_branch
    %16 = sbr.rel (0) target = $region9
  $region8: #{edge_updater_forward.3} parent=0 // pred_region
    _
  $region9: #{edge_updater_forward.3} parent=0 // pred_fallthru
    _
  // Predicated region
  $region10: #{edge_updater_forward.3} parent=0 // pred_check
    _
  $region11: #{edge_updater_forward.3} parent=0 // pred_check_branch
    %18 = sbr.rel (0) target = $region13
  $region12: #{edge_updater_forward.3} parent=0 // pred_region
    _
  $region13: #{edge_updater_forward.3} parent=0 // pred_fallthru
    _
  // Predicated region
  $region14: #{edge_updater_forward.3} parent=0 // pred_check
    _
  $region15: #{edge_updater_forward.3} parent=0 // pred_check_branch
    %20 = sbr.rel (0) target = $region17
  $region16: #{edge_updater_forward.3} parent=0 // pred_region
    _
  $region17: #{edge_updater_forward.3} parent=0 // pred_fallthru
    _
  // Predicated region
  $region18: #{edge_updater_forward.3} parent=0 // pred_check
    _
  $region19: #{edge_updater_forward.3} parent=0 // pred_check_branch
    %22 = sbr.rel (0) target = $region21
  $region20: #{edge_updater_forward.3} parent=0 // pred_region
    _
  $region21: #{edge_updater_forward.3} parent=0 // pred_fallthru
    _
  // Predicated region
  $region22: #{edge_updater_forward.3} parent=0 // pred_check
    _
  $region23: #{edge_updater_forward.3} parent=0 // pred_check_branch
    %24 = sbr.rel (0) target = $region25
  $region24: #{edge_updater_forward.3} parent=0 // pred_region
    _
  $region25: #{edge_updater_forward.3} parent=0 // pred_fallthru
    _
  // Predicated region
  $region26: #{edge_updater_forward.3} parent=0 // pred_check
    _
  $region27: #{edge_updater_forward.3} parent=0 // pred_check_branch
    %26 = sbr.rel (0) target = $region29
  $region28: #{edge_updater_forward.3} parent=0 // pred_region
    _
  $region29: #{edge_updater_forward.3} parent=0 // pred_fallthru
    _
  // Predicated region
  $region30: #{edge_updater_forward.3} parent=0 // pred_check
    _
  $region31: #{edge_updater_forward.3} parent=0 // pred_check_branch
    %28 = sbr.rel (0) target = $region33
  $region32: #{edge_updater_forward.3} parent=0 // pred_region
    _
  $region33: #{edge_updater_forward.3} parent=0 // pred_fallthru
    _
  %v29 = vlaneseq
  %v30 = vand.u32 %v29, 127
  %v31 = vld [vmem:[%s0] sm:$0xff]
  %v32 = vld [vmem:[%s0 + $0x8] sm:$0xff]
  %v33 = vld [vmem:[%s0 + $0x10] sm:$0xff]
  %v34 = vld [vmem:[%s0 + $0x18] sm:$0xff]
  %v35 = vld [vmem:[%s0 + $0x20] sm:$0xff]
  %v36 = vld [vmem:[%s0 + $0x28] sm:$0xff]
  %v37 = vld [vmem:[%s0 + $0x30] sm:$0xff]
  %v38 = vld [vmem:[%s0 + $0x38] sm:$0xff]
  %v39 = vld [vmem:[%s0 + $0x40] sm:$0xff]
  %v40 = vld [vmem:[%s0 + $0x48] sm:$0xff]
  %v41 = vld [vmem:[%s0 + $0x50] sm:$0xff]
  %v42 = vld [vmem:[%s0 + $0x58] sm:$0xff]
  %v43 = vld [vmem:[%s0 + $0x60] sm:$0xff]
  %v44 = vld [vmem:[%s0 + $0x68] sm:$0xff]
  %v45 = vld [vmem:[%s0 + $0x70] sm:$0xff]
  %v46 = vld [vmem:[%s0 + $0x78] sm:$0xff]
  %47 = vset.pattern.permute.xlu0 0
  %48 = vperm.xlu0 %47, %v31
  %v49 = vpop.permute.xlu0 %48
  %50 = vset.pattern.permute.xlu0 0
  %51 = vperm.xlu0 %50, %v32
  %v52 = vpop.permute.xlu0 %51
  %53 = vset.pattern.permute.xlu0 0
  %54 = vperm.xlu0 %53, %v33
  %v55 = vpop.permute.xlu0 %54
  %56 = vset.pattern.permute.xlu0 0
  %57 = vperm.xlu0 %56, %v34
  %v58 = vpop.permute.xlu0 %57
  %59 = vset.pattern.permute.xlu0 0
  %60 = vperm.xlu0 %59, %v35
  %v61 = vpop.permute.xlu0 %60
  %62 = vset.pattern.permute.xlu0 0
  %63 = vperm.xlu0 %62, %v36
  %v64 = vpop.permute.xlu0 %63
  %65 = vset.pattern.permute.xlu0 0
  %66 = vperm.xlu0 %65, %v37
  %v67 = vpop.permute.xlu0 %66
  %68 = vset.pattern.permute.xlu0 0
  %69 = vperm.xlu0 %68, %v38
  %v70 = vpop.permute.xlu0 %69
  %71 = vset.pattern.permute.xlu0 0
  %72 = vperm.xlu0 %71, %v39
  %v73 = vpop.permute.xlu0 %72
  %74 = vset.pattern.permute.xlu0 0
  %75 = vperm.xlu0 %74, %v40
  %v76 = vpop.permute.xlu0 %75
  %77 = vset.pattern.permute.xlu0 0
  %78 = vperm.xlu0 %77, %v41
  %v79 = vpop.permute.xlu0 %78
  %80 = vset.pattern.permute.xlu0 0
  %81 = vperm.xlu0 %80, %v42
  %v82 = vpop.permute.xlu0 %81
  %83 = vset.pattern.permute.xlu0 0
  %84 = vperm.xlu0 %83, %v43
  %v85 = vpop.permute.xlu0 %84
  %86 = vset.pattern.permute.xlu0 0
  %87 = vperm.xlu0 %86, %v44
  %v88 = vpop.permute.xlu0 %87
  %89 = vset.pattern.permute.xlu0 0
  %90 = vperm.xlu0 %89, %v45
  %v91 = vpop.permute.xlu0 %90
  %92 = vset.pattern.permute.xlu0 0
  %93 = vperm.xlu0 %92, %v46
  %v94 = vpop.permute.xlu0 %93
  %vm95 = vcmp.eq.s32.totalorder %v30, %v49
  %vm96 = vcmp.eq.s32.totalorder %v30, %v52
  %vm97 = vcmp.eq.s32.totalorder %v30, %v55
  %vm98 = vcmp.eq.s32.totalorder %v30, %v58
  %vm99 = vcmp.eq.s32.totalorder %v30, %v61
  %vm100 = vcmp.eq.s32.totalorder %v30, %v64
  %vm101 = vcmp.eq.s32.totalorder %v30, %v67
  %vm102 = vcmp.eq.s32.totalorder %v30, %v70
  %vm103 = vcmp.eq.s32.totalorder %v30, %v73
  %vm104 = vcmp.eq.s32.totalorder %v30, %v76
  %vm105 = vcmp.eq.s32.totalorder %v30, %v79
  %vm106 = vcmp.eq.s32.totalorder %v30, %v82
  %vm107 = vcmp.eq.s32.totalorder %v30, %v85
  %vm108 = vcmp.eq.s32.totalorder %v30, %v88
  %vm109 = vcmp.eq.s32.totalorder %v30, %v91
  %vm110 = vcmp.eq.s32.totalorder %v30, %v94
  %v111 = vld [vmem:[%s1] sm:$0xff]
  %v112 = vld [vmem:[%s1 + $0x8] sm:$0xff]
  %v113 = vld [vmem:[%s1 + $0x10] sm:$0xff]
  %v114 = vld [vmem:[%s1 + $0x18] sm:$0xff]
  %v115 = vld [vmem:[%s1 + $0x20] sm:$0xff]
  %v116 = vld [vmem:[%s1 + $0x28] sm:$0xff]
  %v117 = vld [vmem:[%s1 + $0x30] sm:$0xff]
  %v118 = vld [vmem:[%s1 + $0x38] sm:$0xff]
  %v119 = vld [vmem:[%s1 + $0x40] sm:$0xff]
  %v120 = vld [vmem:[%s1 + $0x48] sm:$0xff]
  %v121 = vld [vmem:[%s1 + $0x50] sm:$0xff]
  %v122 = vld [vmem:[%s1 + $0x58] sm:$0xff]
  %v123 = vld [vmem:[%s1 + $0x60] sm:$0xff]
  %v124 = vld [vmem:[%s1 + $0x68] sm:$0xff]
  %v125 = vld [vmem:[%s1 + $0x70] sm:$0xff]
  %v126 = vld [vmem:[%s1 + $0x78] sm:$0xff]
  %127 = vset.pattern.permute.xlu0 0
  %128 = vperm.xlu0 %127, %v111
  %v129 = vpop.permute.xlu0 %128
  %130 = vset.pattern.permute.xlu0 0
  %131 = vperm.xlu0 %130, %v112
  %v132 = vpop.permute.xlu0 %131
  %133 = vset.pattern.permute.xlu0 0
  %134 = vperm.xlu0 %133, %v113
  %v135 = vpop.permute.xlu0 %134
  %136 = vset.pattern.permute.xlu0 0
  %137 = vperm.xlu0 %136, %v114
  %v138 = vpop.permute.xlu0 %137
  %139 = vset.pattern.permute.xlu0 0
  %140 = vperm.xlu0 %139, %v115
  %v141 = vpop.permute.xlu0 %140
  %142 = vset.pattern.permute.xlu0 0
  %143 = vperm.xlu0 %142, %v116
  %v144 = vpop.permute.xlu0 %143
  %145 = vset.pattern.permute.xlu0 0
  %146 = vperm.xlu0 %145, %v117
  %v147 = vpop.permute.xlu0 %146
  %148 = vset.pattern.permute.xlu0 0
  %149 = vperm.xlu0 %148, %v118
  %v150 = vpop.permute.xlu0 %149
  %151 = vset.pattern.permute.xlu0 0
  %152 = vperm.xlu0 %151, %v119
  %v153 = vpop.permute.xlu0 %152
  %154 = vset.pattern.permute.xlu0 0
  %155 = vperm.xlu0 %154, %v120
  %v156 = vpop.permute.xlu0 %155
  %157 = vset.pattern.permute.xlu0 0
  %158 = vperm.xlu0 %157, %v121
  %v159 = vpop.permute.xlu0 %158
  %160 = vset.pattern.permute.xlu0 0
  %161 = vperm.xlu0 %160, %v122
  %v162 = vpop.permute.xlu0 %161
  %163 = vset.pattern.permute.xlu0 0
  %164 = vperm.xlu0 %163, %v123
  %v165 = vpop.permute.xlu0 %164
  %166 = vset.pattern.permute.xlu0 0
  %167 = vperm.xlu0 %166, %v124
  %v168 = vpop.permute.xlu0 %167
  %169 = vset.pattern.permute.xlu0 0
  %170 = vperm.xlu0 %169, %v125
  %v171 = vpop.permute.xlu0 %170
  %172 = vset.pattern.permute.xlu0 0
  %173 = vperm.xlu0 %172, %v126
  %v174 = vpop.permute.xlu0 %173
  %vm175 = vcmp.eq.s32.totalorder %v30, %v129
  %vm176 = vcmp.eq.s32.totalorder %v30, %v132
  %vm177 = vcmp.eq.s32.totalorder %v30, %v135
  %vm178 = vcmp.eq.s32.totalorder %v30, %v138
  %vm179 = vcmp.eq.s32.totalorder %v30, %v141
  %vm180 = vcmp.eq.s32.totalorder %v30, %v144
  %vm181 = vcmp.eq.s32.totalorder %v30, %v147
  %vm182 = vcmp.eq.s32.totalorder %v30, %v150
  %vm183 = vcmp.eq.s32.totalorder %v30, %v153
  %vm184 = vcmp.eq.s32.totalorder %v30, %v156
  %vm185 = vcmp.eq.s32.totalorder %v30, %v159
  %vm186 = vcmp.eq.s32.totalorder %v30, %v162
  %vm187 = vcmp.eq.s32.totalorder %v30, %v165
  %vm188 = vcmp.eq.s32.totalorder %v30, %v168
  %vm189 = vcmp.eq.s32.totalorder %v30, %v171
  %vm190 = vcmp.eq.s32.totalorder %v30, %v174
  %vm191 = vmor %vm95, %vm175
  %vm192 = vmor %vm96, %vm176
  %vm193 = vmor %vm97, %vm177
  %vm194 = vmor %vm98, %vm178
  %vm195 = vmor %vm99, %vm179
  %vm196 = vmor %vm100, %vm180
  %vm197 = vmor %vm101, %vm181
  %vm198 = vmor %vm102, %vm182
  %vm199 = vmor %vm103, %vm183
  %vm200 = vmor %vm104, %vm184
  %vm201 = vmor %vm105, %vm185
  %vm202 = vmor %vm106, %vm186
  %vm203 = vmor %vm107, %vm187
  %vm204 = vmor %vm108, %vm188
  %vm205 = vmor %vm109, %vm189
  %vm206 = vmor %vm110, %vm190
  %v207 = vsel %vm191, 1, 0
  %v208 = vsel %vm192, 1, 0
  %v209 = vsel %vm193, 1, 0
  %v210 = vsel %vm194, 1, 0
  %v211 = vsel %vm195, 1, 0
  %v212 = vsel %vm196, 1, 0
  %v213 = vsel %vm197, 1, 0
  %v214 = vsel %vm198, 1, 0
  %v215 = vsel %vm199, 1, 0
  %v216 = vsel %vm200, 1, 0
  %v217 = vsel %vm201, 1, 0
  %v218 = vsel %vm202, 1, 0
  %v219 = vsel %vm203, 1, 0
  %v220 = vsel %vm204, 1, 0
  %v221 = vsel %vm205, 1, 0
  %v222 = vsel %vm206, 1, 0
  %v223 = vcvt.s32.f32 %v207
  %v224 = vcvt.s32.f32 %v208
  %v225 = vcvt.s32.f32 %v209
  %v226 = vcvt.s32.f32 %v210
  %v227 = vcvt.s32.f32 %v211
  %v228 = vcvt.s32.f32 %v212
  %v229 = vcvt.s32.f32 %v213
  %v230 = vcvt.s32.f32 %v214
  %v231 = vcvt.s32.f32 %v215
  %v232 = vcvt.s32.f32 %v216
  %v233 = vcvt.s32.f32 %v217
  %v234 = vcvt.s32.f32 %v218
  %v235 = vcvt.s32.f32 %v219
  %v236 = vcvt.s32.f32 %v220
  %v237 = vcvt.s32.f32 %v221
  %v238 = vcvt.s32.f32 %v222
  %v239 = vld [vmem:[%s3] sm:$0xff]
  %v240 = vld [vmem:[%s3 + $0x8] sm:$0xff]
  %v241 = vld [vmem:[%s3 + $0x10] sm:$0xff]
  %v242 = vld [vmem:[%s3 + $0x18] sm:$0xff]
  %vm243 = vcmask 261120
  %v245 = vsel %vm243, %v223, 0
  %v248 = vsel %vm243, %v224, 0
  %v251 = vsel %vm243, %v225, 0
  %v254 = vsel %vm243, %v226, 0
  %v257 = vsel %vm243, %v227, 0
  %v260 = vsel %vm243, %v228, 0
  %v263 = vsel %vm243, %v229, 0
  %v266 = vsel %vm243, %v230, 0
  %v269 = vsel %vm243, %v231, 0
  %v272 = vsel %vm243, %v232, 0
  %v275 = vsel %vm243, %v233, 0
  %v278 = vsel %vm243, %v234, 0
  %v281 = vsel %vm243, %v235, 0
  %v284 = vsel %vm243, %v236, 0
  %v287 = vsel %vm243, %v237, 0
  %v290 = vsel %vm243, %v238, 0
  %292 = vmatprep.subr.mxu0 0.0
  %293 = vmatpush1.msra.mxu0 0.0
  %294 = vmatprep.subr.mxu0 0.0
  %295 = vmatpush1.msra.mxu0 0.0
  %296 = vmatprep.subr.mxu0 0.0
  %297 = vmatpush1.msra.mxu0 0.0
  %298 = vmatprep.subr.mxu0 0.0
  %299 = vmatpush1.msra.mxu0 0.0
  %300 = vmatprep.subr.mxu0 0.0
  %301 = vmatpush1.msra.mxu0 0.0
  %302 = vmatprep.subr.mxu0 0.0
  %303 = vmatpush1.msra.mxu0 0.0
  %304 = vmatprep.subr.mxu0 0.0
  %305 = vmatpush1.msra.mxu0 0.0
  %306 = vmatprep.subr.mxu0 0.0
  %307 = vmatpush1.msra.mxu0 0.0
  %308 = vmatprep.subr.mxu0 0.0
  %309 = vmatpush1.msra.mxu0 0.0
  %310 = vmatprep.subr.mxu0 0.0
  %311 = vmatpush1.msra.mxu0 0.0
  %312 = vmatprep.subr.mxu0 0.0
  %313 = vmatpush1.msra.mxu0 0.0
  %314 = vmatprep.subr.mxu0 0.0
  %315 = vmatpush1.msra.mxu0 0.0
  %316 = vmatprep.subr.mxu0 0.0
  %317 = vmatpush1.msra.mxu0 %v242
  %318 = vmatprep.subr.mxu0 0.0
  %319 = vmatpush1.msra.mxu0 %v241
  %320 = vmatprep.subr.mxu0 0.0
  %321 = vmatpush1.msra.mxu0 %v240
  %322 = vmatprep.subr.mxu0 0.0
  %323 = vmatpush1.msra.mxu0 %v239
  %324 = vmatprep.subr.mxu0 0.0
  %325 = vmatpush2.msra.mxu0 0.0
  %326 = vmatprep.subr.mxu0 0.0
  %327 = vmatpush2.msra.mxu0 0.0
  %328 = vmatprep.subr.mxu0 0.0
  %329 = vmatpush2.msra.mxu0 0.0
  %330 = vmatprep.subr.mxu0 0.0
  %331 = vmatpush2.msra.mxu0 0.0
  %332 = vmatprep.subr.mxu0 0.0
  %333 = vmatpush2.msra.mxu0 0.0
  %334 = vmatprep.subr.mxu0 0.0
  %335 = vmatpush2.msra.mxu0 0.0
  %336 = vmatprep.subr.mxu0 0.0
  %337 = vmatpush2.msra.mxu0 0.0
  %338 = vmatprep.subr.mxu0 0.0
  %339 = vmatpush2.msra.mxu0 0.0
  %340 = vmatprep.subr.mxu0 0.0
  %341 = vmatpush2.msra.mxu0 0.0
  %342 = vmatprep.subr.mxu0 0.0
  %343 = vmatpush2.msra.mxu0 0.0
  %344 = vmatprep.subr.mxu0 0.0
  %345 = vmatpush2.msra.mxu0 0.0
  %346 = vmatprep.subr.mxu0 0.0
  %347 = vmatpush2.msra.mxu0 0.0
  %348 = vmatprep.subr.mxu0 0.0
  %349 = vmatpush2.msra.mxu0 0.0
  %350 = vmatprep.subr.mxu0 0.0
  %351 = vmatpush2.msra.mxu0 0.0
  %352 = vmatprep.subr.mxu0 0.0
  %353 = vmatpush2.msra.mxu0 0.0
  %354 = vmatprep.subr.mxu0 0.0
  %355 = vmatpush2.msra.mxu0 0.0
  %356 = vmatprep.mubr.f32.mxu0 0.0
  %357 = vmatmul.mubr.f32.gmra.mxu0 %v245
  %v358 = vpop.f32.mrf.mxu0
  %v359 = vadd.f32 0.0, %v358
  %v360 = vpop.f32.mrf.mxu0
  %361 = vmatprep.mubr.f32.mxu0 0.0
  %362 = vmatmul.mubr.f32.gmra.mxu0 %v248
  %v363 = vpop.f32.mrf.mxu0
  %v364 = vadd.f32 0.0, %v363
  %v365 = vpop.f32.mrf.mxu0
  %366 = vmatprep.mubr.f32.mxu0 0.0
  %367 = vmatmul.mubr.f32.gmra.mxu0 %v251
  %v368 = vpop.f32.mrf.mxu0
  %v369 = vadd.f32 0.0, %v368
  %v370 = vpop.f32.mrf.mxu0
  %371 = vmatprep.mubr.f32.mxu0 0.0
  %372 = vmatmul.mubr.f32.gmra.mxu0 %v254
  %v373 = vpop.f32.mrf.mxu0
  %v374 = vadd.f32 0.0, %v373
  %v375 = vpop.f32.mrf.mxu0
  %376 = vmatprep.mubr.f32.mxu0 0.0
  %377 = vmatmul.mubr.f32.gmra.mxu0 %v257
  %v378 = vpop.f32.mrf.mxu0
  %v379 = vadd.f32 0.0, %v378
  %v380 = vpop.f32.mrf.mxu0
  %381 = vmatprep.mubr.f32.mxu0 0.0
  %382 = vmatmul.mubr.f32.gmra.mxu0 %v260
  %v383 = vpop.f32.mrf.mxu0
  %v384 = vadd.f32 0.0, %v383
  %v385 = vpop.f32.mrf.mxu0
  %386 = vmatprep.mubr.f32.mxu0 0.0
  %387 = vmatmul.mubr.f32.gmra.mxu0 %v263
  %v388 = vpop.f32.mrf.mxu0
  %v389 = vadd.f32 0.0, %v388
  %v390 = vpop.f32.mrf.mxu0
  %391 = vmatprep.mubr.f32.mxu0 0.0
  %392 = vmatmul.mubr.f32.gmra.mxu0 %v266
  %v393 = vpop.f32.mrf.mxu0
  %v394 = vadd.f32 0.0, %v393
  %v395 = vpop.f32.mrf.mxu0
  %396 = vmatprep.mubr.f32.mxu0 0.0
  %397 = vmatmul.mubr.f32.gmra.mxu0 %v269
  %v398 = vpop.f32.mrf.mxu0
  %v399 = vadd.f32 0.0, %v398
  %v400 = vpop.f32.mrf.mxu0
  %401 = vmatprep.mubr.f32.mxu0 0.0
  %402 = vmatmul.mubr.f32.gmra.mxu0 %v272
  %v403 = vpop.f32.mrf.mxu0
  %v404 = vadd.f32 0.0, %v403
  %v405 = vpop.f32.mrf.mxu0
  %406 = vmatprep.mubr.f32.mxu0 0.0
  %407 = vmatmul.mubr.f32.gmra.mxu0 %v275
  %v408 = vpop.f32.mrf.mxu0
  %v409 = vadd.f32 0.0, %v408
  %v410 = vpop.f32.mrf.mxu0
  %411 = vmatprep.mubr.f32.mxu0 0.0
  %412 = vmatmul.mubr.f32.gmra.mxu0 %v278
  %v413 = vpop.f32.mrf.mxu0
  %v414 = vadd.f32 0.0, %v413
  %v415 = vpop.f32.mrf.mxu0
  %416 = vmatprep.mubr.f32.mxu0 0.0
  %417 = vmatmul.mubr.f32.gmra.mxu0 %v281
  %v418 = vpop.f32.mrf.mxu0
  %v419 = vadd.f32 0.0, %v418
  %v420 = vpop.f32.mrf.mxu0
  %421 = vmatprep.mubr.f32.mxu0 0.0
  %422 = vmatmul.mubr.f32.gmra.mxu0 %v284
  %v423 = vpop.f32.mrf.mxu0
  %v424 = vadd.f32 0.0, %v423
  %v425 = vpop.f32.mrf.mxu0
  %426 = vmatprep.mubr.f32.mxu0 0.0
  %427 = vmatmul.mubr.f32.gmra.mxu0 %v287
  %v428 = vpop.f32.mrf.mxu0
  %v429 = vadd.f32 0.0, %v428
  %v430 = vpop.f32.mrf.mxu0
  %431 = vmatprep.mubr.f32.mxu0 0.0
  %432 = vmatmul.mubr.f32.gmra.mxu0 %v290
  %v433 = vpop.f32.mrf.mxu0
  %v434 = vadd.f32 0.0, %v433
  %v435 = vpop.f32.mrf.mxu0
  %436 = vdwg.mxu0
  %v437 = vld [vmem:[%s2] sm:$0xff]
  %v438 = vld [vmem:[%s2 + $0x8] sm:$0xff]
  %v439 = vld [vmem:[%s2 + $0x10] sm:$0xff]
  %v440 = vld [vmem:[%s2 + $0x18] sm:$0xff]
  %v441 = vld [vmem:[%s2 + $0x20] sm:$0xff]
  %v442 = vld [vmem:[%s2 + $0x28] sm:$0xff]
  %v443 = vld [vmem:[%s2 + $0x30] sm:$0xff]
  %v444 = vld [vmem:[%s2 + $0x38] sm:$0xff]
  %v445 = vld [vmem:[%s2 + $0x40] sm:$0xff]
  %v446 = vld [vmem:[%s2 + $0x48] sm:$0xff]
  %v447 = vld [vmem:[%s2 + $0x50] sm:$0xff]
  %v448 = vld [vmem:[%s2 + $0x58] sm:$0xff]
  %v449 = vld [vmem:[%s2 + $0x60] sm:$0xff]
  %v450 = vld [vmem:[%s2 + $0x68] sm:$0xff]
  %v451 = vld [vmem:[%s2 + $0x70] sm:$0xff]
  %v452 = vld [vmem:[%s2 + $0x78] sm:$0xff]
  %v453 = vld [vmem:[%s4] sm:$0xff]
  %v454 = vld [vmem:[%s4 + $0x8] sm:$0xff]
  %v455 = vld [vmem:[%s4 + $0x10] sm:$0xff]
  %v456 = vld [vmem:[%s4 + $0x18] sm:$0xff]
  %v457 = vld [vmem:[%s4 + $0x20] sm:$0xff]
  %v458 = vld [vmem:[%s4 + $0x28] sm:$0xff]
  %v459 = vld [vmem:[%s4 + $0x30] sm:$0xff]
  %v460 = vld [vmem:[%s4 + $0x38] sm:$0xff]
  %v461 = vld [vmem:[%s4 + $0x40] sm:$0xff]
  %v462 = vld [vmem:[%s4 + $0x48] sm:$0xff]
  %v463 = vld [vmem:[%s4 + $0x50] sm:$0xff]
  %v464 = vld [vmem:[%s4 + $0x58] sm:$0xff]
  %v465 = vld [vmem:[%s4 + $0x60] sm:$0xff]
  %v466 = vld [vmem:[%s4 + $0x68] sm:$0xff]
  %v467 = vld [vmem:[%s4 + $0x70] sm:$0xff]
  %v468 = vld [vmem:[%s4 + $0x78] sm:$0xff]
  %469 = vmatprep.subr.mxu0 0.0
  %470 = vmatpush1.msra.mxu0 %v468
  %471 = vmatprep.subr.mxu0 0.0
  %472 = vmatpush1.msra.mxu0 %v467
  %473 = vmatprep.subr.mxu0 0.0
  %474 = vmatpush1.msra.mxu0 %v466
  %475 = vmatprep.subr.mxu0 0.0
  %476 = vmatpush1.msra.mxu0 %v465
  %477 = vmatprep.subr.mxu0 0.0
  %478 = vmatpush1.msra.mxu0 %v464
  %479 = vmatprep.subr.mxu0 0.0
  %480 = vmatpush1.msra.mxu0 %v463
  %481 = vmatprep.subr.mxu0 0.0
  %482 = vmatpush1.msra.mxu0 %v462
  %483 = vmatprep.subr.mxu0 0.0
  %484 = vmatpush1.msra.mxu0 %v461
  %485 = vmatprep.subr.mxu0 0.0
  %486 = vmatpush1.msra.mxu0 %v460
  %487 = vmatprep.subr.mxu0 0.0
  %488 = vmatpush1.msra.mxu0 %v459
  %489 = vmatprep.subr.mxu0 0.0
  %490 = vmatpush1.msra.mxu0 %v458
  %491 = vmatprep.subr.mxu0 0.0
  %492 = vmatpush1.msra.mxu0 %v457
  %493 = vmatprep.subr.mxu0 0.0
  %494 = vmatpush1.msra.mxu0 %v456
  %495 = vmatprep.subr.mxu0 0.0
  %496 = vmatpush1.msra.mxu0 %v455
  %497 = vmatprep.subr.mxu0 0.0
  %498 = vmatpush1.msra.mxu0 %v454
  %499 = vmatprep.subr.mxu0 0.0
  %500 = vmatpush1.msra.mxu0 %v453
  %501 = vmatprep.subr.mxu0 0.0
  %502 = vmatpush2.msra.mxu0 0.0
  %503 = vmatprep.subr.mxu0 0.0
  %504 = vmatpush2.msra.mxu0 0.0
  %505 = vmatprep.subr.mxu0 0.0
  %506 = vmatpush2.msra.mxu0 0.0
  %507 = vmatprep.subr.mxu0 0.0
  %508 = vmatpush2.msra.mxu0 0.0
  %509 = vmatprep.subr.mxu0 0.0
  %510 = vmatpush2.msra.mxu0 0.0
  %511 = vmatprep.subr.mxu0 0.0
  %512 = vmatpush2.msra.mxu0 0.0
  %513 = vmatprep.subr.mxu0 0.0
  %514 = vmatpush2.msra.mxu0 0.0
  %515 = vmatprep.subr.mxu0 0.0
  %516 = vmatpush2.msra.mxu0 0.0
  %517 = vmatprep.subr.mxu0 0.0
  %518 = vmatpush2.msra.mxu0 0.0
  %519 = vmatprep.subr.mxu0 0.0
  %520 = vmatpush2.msra.mxu0 0.0
  %521 = vmatprep.subr.mxu0 0.0
  %522 = vmatpush2.msra.mxu0 0.0
  %523 = vmatprep.subr.mxu0 0.0
  %524 = vmatpush2.msra.mxu0 0.0
  %525 = vmatprep.subr.mxu0 0.0
  %526 = vmatpush2.msra.mxu0 0.0
  %527 = vmatprep.subr.mxu0 0.0
  %528 = vmatpush2.msra.mxu0 0.0
  %529 = vmatprep.subr.mxu0 0.0
  %530 = vmatpush2.msra.mxu0 0.0
  %531 = vmatprep.subr.mxu0 0.0
  %532 = vmatpush2.msra.mxu0 0.0
  %533 = vmatprep.mubr.f32.mxu0 0.0
  %534 = vmatmul.mubr.f32.gmra.mxu0 %v437
  %v535 = vpop.f32.mrf.mxu0
  %v536 = vadd.f32 %v359, %v535
  %v537 = vpop.f32.mrf.mxu0
  %538 = vmatprep.mubr.f32.mxu0 0.0
  %539 = vmatmul.mubr.f32.gmra.mxu0 %v438
  %v540 = vpop.f32.mrf.mxu0
  %v541 = vadd.f32 %v364, %v540
  %v542 = vpop.f32.mrf.mxu0
  %543 = vmatprep.mubr.f32.mxu0 0.0
  %544 = vmatmul.mubr.f32.gmra.mxu0 %v439
  %v545 = vpop.f32.mrf.mxu0
  %v546 = vadd.f32 %v369, %v545
  %v547 = vpop.f32.mrf.mxu0
  %548 = vmatprep.mubr.f32.mxu0 0.0
  %549 = vmatmul.mubr.f32.gmra.mxu0 %v440
  %v550 = vpop.f32.mrf.mxu0
  %v551 = vadd.f32 %v374, %v550
  %v552 = vpop.f32.mrf.mxu0
  %553 = vmatprep.mubr.f32.mxu0 0.0
  %554 = vmatmul.mubr.f32.gmra.mxu0 %v441
  %v555 = vpop.f32.mrf.mxu0
  %v556 = vadd.f32 %v379, %v555
  %v557 = vpop.f32.mrf.mxu0
  %558 = vmatprep.mubr.f32.mxu0 0.0
  %559 = vmatmul.mubr.f32.gmra.mxu0 %v442
  %v560 = vpop.f32.mrf.mxu0
  %v561 = vadd.f32 %v384, %v560
  %v562 = vpop.f32.mrf.mxu0
  %563 = vmatprep.mubr.f32.mxu0 0.0
  %564 = vmatmul.mubr.f32.gmra.mxu0 %v443
  %v565 = vpop.f32.mrf.mxu0
  %v566 = vadd.f32 %v389, %v565
  %v567 = vpop.f32.mrf.mxu0
  %568 = vmatprep.mubr.f32.mxu0 0.0
  %569 = vmatmul.mubr.f32.gmra.mxu0 %v444
  %v570 = vpop.f32.mrf.mxu0
  %v571 = vadd.f32 %v394, %v570
  %v572 = vpop.f32.mrf.mxu0
  %573 = vmatprep.mubr.f32.mxu0 0.0
  %574 = vmatmul.mubr.f32.gmra.mxu0 %v445
  %v575 = vpop.f32.mrf.mxu0
  %v576 = vadd.f32 %v399, %v575
  %v577 = vpop.f32.mrf.mxu0
  %578 = vmatprep.mubr.f32.mxu0 0.0
  %579 = vmatmul.mubr.f32.gmra.mxu0 %v446
  %v580 = vpop.f32.mrf.mxu0
  %v581 = vadd.f32 %v404, %v580
  %v582 = vpop.f32.mrf.mxu0
  %583 = vmatprep.mubr.f32.mxu0 0.0
  %584 = vmatmul.mubr.f32.gmra.mxu0 %v447
  %v585 = vpop.f32.mrf.mxu0
  %v586 = vadd.f32 %v409, %v585
  %v587 = vpop.f32.mrf.mxu0
  %588 = vmatprep.mubr.f32.mxu0 0.0
  %589 = vmatmul.mubr.f32.gmra.mxu0 %v448
  %v590 = vpop.f32.mrf.mxu0
  %v591 = vadd.f32 %v414, %v590
  %v592 = vpop.f32.mrf.mxu0
  %593 = vmatprep.mubr.f32.mxu0 0.0
  %594 = vmatmul.mubr.f32.gmra.mxu0 %v449
  %v595 = vpop.f32.mrf.mxu0
  %v596 = vadd.f32 %v419, %v595
  %v597 = vpop.f32.mrf.mxu0
  %598 = vmatprep.mubr.f32.mxu0 0.0
  %599 = vmatmul.mubr.f32.gmra.mxu0 %v450
  %v600 = vpop.f32.mrf.mxu0
  %v601 = vadd.f32 %v424, %v600
  %v602 = vpop.f32.mrf.mxu0
  %603 = vmatprep.mubr.f32.mxu0 0.0
  %604 = vmatmul.mubr.f32.gmra.mxu0 %v451
  %v605 = vpop.f32.mrf.mxu0
  %v606 = vadd.f32 %v429, %v605
  %v607 = vpop.f32.mrf.mxu0
  %608 = vmatprep.mubr.f32.mxu0 0.0
  %609 = vmatmul.mubr.f32.gmra.mxu0 %v452
  %v610 = vpop.f32.mrf.mxu0
  %v611 = vadd.f32 %v434, %v610
  %v612 = vpop.f32.mrf.mxu0
  %613 = vdwg.mxu0
  %v614 = vld [vmem:[%s5] sm:$0x1]
  %v616 = vlaneseq
  %v617 = vshrl.u32 %v616, 7
  %v618 = vsub.s32 0, %v617
  %v619 = vrot.slane %v614, %v618
  %v621 = vadd.f32 %v536, %v619
  %v622 = vadd.f32 %v541, %v619
  %v623 = vadd.f32 %v546, %v619
  %v624 = vadd.f32 %v551, %v619
  %v625 = vadd.f32 %v556, %v619
  %v626 = vadd.f32 %v561, %v619
  %v627 = vadd.f32 %v566, %v619
  %v628 = vadd.f32 %v571, %v619
  %v629 = vadd.f32 %v576, %v619
  %v630 = vadd.f32 %v581, %v619
  %v631 = vadd.f32 %v586, %v619
  %v632 = vadd.f32 %v591, %v619
  %v633 = vadd.f32 %v596, %v619
  %v634 = vadd.f32 %v601, %v619
  %v635 = vadd.f32 %v606, %v619
  %v636 = vadd.f32 %v611, %v619
  %v637 = vmax.f32 %v621, 0.0
  %v638 = vmax.f32 %v622, 0.0
  %v639 = vmax.f32 %v623, 0.0
  %v640 = vmax.f32 %v624, 0.0
  %v641 = vmax.f32 %v625, 0.0
  %v642 = vmax.f32 %v626, 0.0
  %v643 = vmax.f32 %v627, 0.0
  %v644 = vmax.f32 %v628, 0.0
  %v645 = vmax.f32 %v629, 0.0
  %v646 = vmax.f32 %v630, 0.0
  %v647 = vmax.f32 %v631, 0.0
  %v648 = vmax.f32 %v632, 0.0
  %v649 = vmax.f32 %v633, 0.0
  %v650 = vmax.f32 %v634, 0.0
  %v651 = vmax.f32 %v635, 0.0
  %v652 = vmax.f32 %v636, 0.0
  %v653 = vld [vmem:[%s6] sm:$0xff]
  %v654 = vld [vmem:[%s6 + $0x8] sm:$0xff]
  %v655 = vld [vmem:[%s6 + $0x10] sm:$0xff]
  %v656 = vld [vmem:[%s6 + $0x18] sm:$0xff]
  %v657 = vld [vmem:[%s6 + $0x20] sm:$0xff]
  %v658 = vld [vmem:[%s6 + $0x28] sm:$0xff]
  %v659 = vld [vmem:[%s6 + $0x30] sm:$0xff]
  %v660 = vld [vmem:[%s6 + $0x38] sm:$0xff]
  %v661 = vld [vmem:[%s6 + $0x40] sm:$0xff]
  %v662 = vld [vmem:[%s6 + $0x48] sm:$0xff]
  %v663 = vld [vmem:[%s6 + $0x50] sm:$0xff]
  %v664 = vld [vmem:[%s6 + $0x58] sm:$0xff]
  %v665 = vld [vmem:[%s6 + $0x60] sm:$0xff]
  %v666 = vld [vmem:[%s6 + $0x68] sm:$0xff]
  %v667 = vld [vmem:[%s6 + $0x70] sm:$0xff]
  %v668 = vld [vmem:[%s6 + $0x78] sm:$0xff]
  %v669 = vld [vmem:[%s7] sm:$0x1]
  %v671 = vlaneseq
  %v672 = vshrl.u32 %v671, 7
  %v673 = vsub.s32 0, %v672
  %v674 = vrot.slane %v669, %v673
  %676 = vmatprep.subr.mxu0 0.0
  %677 = vmatpush1.msra.mxu0 %v668
  %678 = vmatprep.subr.mxu0 0.0
  %679 = vmatpush1.msra.mxu0 %v667
  %680 = vmatprep.subr.mxu0 0.0
  %681 = vmatpush1.msra.mxu0 %v666
  %682 = vmatprep.subr.mxu0 0.0
  %683 = vmatpush1.msra.mxu0 %v665
  %684 = vmatprep.subr.mxu0 0.0
  %685 = vmatpush1.msra.mxu0 %v664
  %686 = vmatprep.subr.mxu0 0.0
  %687 = vmatpush1.msra.mxu0 %v663
  %688 = vmatprep.subr.mxu0 0.0
  %689 = vmatpush1.msra.mxu0 %v662
  %690 = vmatprep.subr.mxu0 0.0
  %691 = vmatpush1.msra.mxu0 %v661
  %692 = vmatprep.subr.mxu0 0.0
  %693 = vmatpush1.msra.mxu0 %v660
  %694 = vmatprep.subr.mxu0 0.0
  %695 = vmatpush1.msra.mxu0 %v659
  %696 = vmatprep.subr.mxu0 0.0
  %697 = vmatpush1.msra.mxu0 %v658
  %698 = vmatprep.subr.mxu0 0.0
  %699 = vmatpush1.msra.mxu0 %v657
  %700 = vmatprep.subr.mxu0 0.0
  %701 = vmatpush1.msra.mxu0 %v656
  %702 = vmatprep.subr.mxu0 0.0
  %703 = vmatpush1.msra.mxu0 %v655
  %704 = vmatprep.subr.mxu0 0.0
  %705 = vmatpush1.msra.mxu0 %v654
  %706 = vmatprep.subr.mxu0 0.0
  %707 = vmatpush1.msra.mxu0 %v653
  %708 = vmatprep.subr.mxu0 0.0
  %709 = vmatpush2.msra.mxu0 0.0
  %710 = vmatprep.subr.mxu0 0.0
  %711 = vmatpush2.msra.mxu0 0.0
  %712 = vmatprep.subr.mxu0 0.0
  %713 = vmatpush2.msra.mxu0 0.0
  %714 = vmatprep.subr.mxu0 0.0
  %715 = vmatpush2.msra.mxu0 0.0
  %716 = vmatprep.subr.mxu0 0.0
  %717 = vmatpush2.msra.mxu0 0.0
  %718 = vmatprep.subr.mxu0 0.0
  %719 = vmatpush2.msra.mxu0 0.0
  %720 = vmatprep.subr.mxu0 0.0
  %721 = vmatpush2.msra.mxu0 0.0
  %722 = vmatprep.subr.mxu0 0.0
  %723 = vmatpush2.msra.mxu0 0.0
  %724 = vmatprep.subr.mxu0 0.0
  %725 = vmatpush2.msra.mxu0 0.0
  %726 = vmatprep.subr.mxu0 0.0
  %727 = vmatpush2.msra.mxu0 0.0
  %728 = vmatprep.subr.mxu0 0.0
  %729 = vmatpush2.msra.mxu0 0.0
  %730 = vmatprep.subr.mxu0 0.0
  %731 = vmatpush2.msra.mxu0 0.0
  %732 = vmatprep.subr.mxu0 0.0
  %733 = vmatpush2.msra.mxu0 0.0
  %734 = vmatprep.subr.mxu0 0.0
  %735 = vmatpush2.msra.mxu0 0.0
  %736 = vmatprep.subr.mxu0 0.0
  %737 = vmatpush2.msra.mxu0 0.0
  %738 = vmatprep.subr.mxu0 0.0
  %739 = vmatpush2.msra.mxu0 0.0
  %740 = vmatprep.mubr.f32.mxu0 0.0
  %741 = vmatmul.mubr.f32.gmra.mxu0 %v637
  %v742 = vpop.f32.mrf.mxu0
  %v743 = vadd.f32 %v674, %v742
  %v744 = vpop.f32.mrf.mxu0
  %745 = vmatprep.mubr.f32.mxu0 0.0
  %746 = vmatmul.mubr.f32.gmra.mxu0 %v638
  %v747 = vpop.f32.mrf.mxu0
  %v748 = vadd.f32 %v674, %v747
  %v749 = vpop.f32.mrf.mxu0
  %750 = vmatprep.mubr.f32.mxu0 0.0
  %751 = vmatmul.mubr.f32.gmra.mxu0 %v639
  %v752 = vpop.f32.mrf.mxu0
  %v753 = vadd.f32 %v674, %v752
  %v754 = vpop.f32.mrf.mxu0
  %755 = vmatprep.mubr.f32.mxu0 0.0
  %756 = vmatmul.mubr.f32.gmra.mxu0 %v640
  %v757 = vpop.f32.mrf.mxu0
  %v758 = vadd.f32 %v674, %v757
  %v759 = vpop.f32.mrf.mxu0
  %760 = vmatprep.mubr.f32.mxu0 0.0
  %761 = vmatmul.mubr.f32.gmra.mxu0 %v641
  %v762 = vpop.f32.mrf.mxu0
  %v763 = vadd.f32 %v674, %v762
  %v764 = vpop.f32.mrf.mxu0
  %765 = vmatprep.mubr.f32.mxu0 0.0
  %766 = vmatmul.mubr.f32.gmra.mxu0 %v642
  %v767 = vpop.f32.mrf.mxu0
  %v768 = vadd.f32 %v674, %v767
  %v769 = vpop.f32.mrf.mxu0
  %770 = vmatprep.mubr.f32.mxu0 0.0
  %771 = vmatmul.mubr.f32.gmra.mxu0 %v643
  %v772 = vpop.f32.mrf.mxu0
  %v773 = vadd.f32 %v674, %v772
  %v774 = vpop.f32.mrf.mxu0
  %775 = vmatprep.mubr.f32.mxu0 0.0
  %776 = vmatmul.mubr.f32.gmra.mxu0 %v644
  %v777 = vpop.f32.mrf.mxu0
  %v778 = vadd.f32 %v674, %v777
  %v779 = vpop.f32.mrf.mxu0
  %780 = vmatprep.mubr.f32.mxu0 0.0
  %781 = vmatmul.mubr.f32.gmra.mxu0 %v645
  %v782 = vpop.f32.mrf.mxu0
  %v783 = vadd.f32 %v674, %v782
  %v784 = vpop.f32.mrf.mxu0
  %785 = vmatprep.mubr.f32.mxu0 0.0
  %786 = vmatmul.mubr.f32.gmra.mxu0 %v646
  %v787 = vpop.f32.mrf.mxu0
  %v788 = vadd.f32 %v674, %v787
  %v789 = vpop.f32.mrf.mxu0
  %790 = vmatprep.mubr.f32.mxu0 0.0
  %791 = vmatmul.mubr.f32.gmra.mxu0 %v647
  %v792 = vpop.f32.mrf.mxu0
  %v793 = vadd.f32 %v674, %v792
  %v794 = vpop.f32.mrf.mxu0
  %795 = vmatprep.mubr.f32.mxu0 0.0
  %796 = vmatmul.mubr.f32.gmra.mxu0 %v648
  %v797 = vpop.f32.mrf.mxu0
  %v798 = vadd.f32 %v674, %v797
  %v799 = vpop.f32.mrf.mxu0
  %800 = vmatprep.mubr.f32.mxu0 0.0
  %801 = vmatmul.mubr.f32.gmra.mxu0 %v649
  %v802 = vpop.f32.mrf.mxu0
  %v803 = vadd.f32 %v674, %v802
  %v804 = vpop.f32.mrf.mxu0
  %805 = vmatprep.mubr.f32.mxu0 0.0
  %806 = vmatmul.mubr.f32.gmra.mxu0 %v650
  %v807 = vpop.f32.mrf.mxu0
  %v808 = vadd.f32 %v674, %v807
  %v809 = vpop.f32.mrf.mxu0
  %810 = vmatprep.mubr.f32.mxu0 0.0
  %811 = vmatmul.mubr.f32.gmra.mxu0 %v651
  %v812 = vpop.f32.mrf.mxu0
  %v813 = vadd.f32 %v674, %v812
  %v814 = vpop.f32.mrf.mxu0
  %815 = vmatprep.mubr.f32.mxu0 0.0
  %816 = vmatmul.mubr.f32.gmra.mxu0 %v652
  %v817 = vpop.f32.mrf.mxu0
  %v818 = vadd.f32 %v674, %v817
  %v819 = vpop.f32.mrf.mxu0
  %820 = vdwg.mxu0
  %821 = vst [vmem:[%s8] sm:$0xff] %v743
  %822 = vst [vmem:[%s8 + $0x8] sm:$0xff] %v748
  %823 = vst [vmem:[%s8 + $0x10] sm:$0xff] %v753
  %824 = vst [vmem:[%s8 + $0x18] sm:$0xff] %v758
  %825 = vst [vmem:[%s8 + $0x20] sm:$0xff] %v763
  %826 = vst [vmem:[%s8 + $0x28] sm:$0xff] %v768
  %827 = vst [vmem:[%s8 + $0x30] sm:$0xff] %v773
  %828 = vst [vmem:[%s8 + $0x38] sm:$0xff] %v778
  %829 = vst [vmem:[%s8 + $0x40] sm:$0xff] %v783
  %830 = vst [vmem:[%s8 + $0x48] sm:$0xff] %v788
  %831 = vst [vmem:[%s8 + $0x50] sm:$0xff] %v793
  %832 = vst [vmem:[%s8 + $0x58] sm:$0xff] %v798
  %833 = vst [vmem:[%s8 + $0x60] sm:$0xff] %v803
  %834 = vst [vmem:[%s8 + $0x68] sm:$0xff] %v808
  %835 = vst [vmem:[%s8 + $0x70] sm:$0xff] %v813
  %836 = vst [vmem:[%s8 + $0x78] sm:$0xff] %v818
  // Predicated region
  $region34: #{edge_updater_forward.3} parent=0 // pred_check
    _
  $region35: #{edge_updater_forward.3} parent=0 // pred_check_branch
    %838 = sbr.rel (0) target = $region37
  $region36: #{edge_updater_forward.3} parent=0 // pred_region
    _
  $region37: #{edge_updater_forward.3} parent=0 // pred_fallthru
    _
  // Predicated region
  $region38: #{edge_updater_forward.3} parent=0 // pred_check
    _
  $region39: #{edge_updater_forward.3} parent=0 // pred_check_branch
    %840 = sbr.rel (0) target = $region41
  $region40: #{edge_updater_forward.3} parent=0 // pred_region
    _
  $region41: #{edge_updater_forward.3} parent=0 // pred_fallthru
    _

</llo_original>
